<compile_context>
chip_gen: v7x
topology: tpu7x:2x2x1
jax: 0.10.0
libtpu: 0.0.40
codegen_flags: <defaults>
</compile_context>

<pallas_src>
import functools

import numpy as np
import jax
import jax.numpy as jnp
from jax.experimental import pallas as pl
from jax.experimental.pallas import tpu as pltpu

LN_EPS = 1e-5              # nn.LayerNorm default eps
INV_SQRT2 = 0.7071067811865476
NEG_BIG = -1e30


# ----------------------------- in-kernel math ----------------------------- #
def _layernorm(x, w, b):
    mu = jnp.mean(x, axis=-1, keepdims=True)
    var = jnp.mean((x - mu) ** 2, axis=-1, keepdims=True)
    return (x - mu) * jax.lax.rsqrt(var + LN_EPS) * w + b


def _gelu_exact(x):  # matches torch nn.GELU (erf form)
    return 0.5 * x * (1.0 + jax.lax.erf(x * INV_SQRT2))


# ------------------------------ fused Pallas kernel ------------------------ #
def encoder_kernel(x_ref, pos_ref,
                   qkvw_ref, pw_ref, f1w_ref, f2w_ref,
                   vecs_ref, fnw_ref, fnb_ref,
                   o_ref, act_ref, ctx_ref, *, num_heads, lk):
    # grid = (layer, batch). Weight block index depends only on `layer`, so the
    # same weight slabs are reused for every batch element of a layer.
    layer = pl.program_id(0)
    b = pl.program_id(1)
    last_layer = pl.num_programs(0) - 1

    # Layer 0: load the kept tokens and fuse the positional-embedding add.
    @pl.when(layer == 0)
    def _():
        act_ref[b] = x_ref[0] + pos_ref[0]

    x = act_ref[b]                                 # (Lp, D) f32, VMEM-resident
    Lp, D = x.shape
    Dh = f1w_ref.shape[2]
    hd = D // num_heads
    scale = 1.0 / float(hd) ** 0.5

    # coalesced per-layer vector parameters (one DMA per layer).
    n1w = vecs_ref[0, 0:1, :D]
    n1b = vecs_ref[0, 1:2, :D]
    qkvb = vecs_ref[0, 2:3, :3 * D]
    pb = vecs_ref[0, 3:4, :D]
    n2w = vecs_ref[0, 4:5, :D]
    n2b = vecs_ref[0, 5:6, :D]
    f1b = vecs_ref[0, 6:7, :Dh]
    f2b = vecs_ref[0, 7:8, :D]

    # ---- attention branch: x + proj(MHSA(norm1(x))) ----
    h = _layernorm(x, n1w, n1b).astype(jnp.bfloat16)
    # single lane-dense QKV projection: (Lp, D) @ (D, 3D) -> (Lp, 3D)
    qkv = jnp.dot(h, qkvw_ref[0], preferred_element_type=jnp.float32) + qkvb
    q_all = qkv[:, 0:D]
    k_all = qkv[:, D:2 * D]
    v_all = qkv[:, 2 * D:3 * D]

    # TODO(synk): for num_heads >= 12 switch this static unroll to a fori_loop
    # over heads to bound vreg live ranges (per-head slices at dynamic offsets).
    for hh in range(num_heads):
        sl = slice(hh * hd, (hh + 1) * hd)
        qh = q_all[:, sl].astype(jnp.bfloat16)
        kh = k_all[:, sl].astype(jnp.bfloat16)
        vh = v_all[:, sl].astype(jnp.bfloat16)
        # scores: (Lp, hd) x (Lp, hd)^T -> (Lp, Lp), contracted on head dim.
        s = jax.lax.dot_general(qh, kh, (((1,), (1,)), ((), ())),
                                preferred_element_type=jnp.float32) * scale
        if lk < Lp:  # mask padded key rows (static condition, static lk)
            col = jax.lax.broadcasted_iota(jnp.int32, (Lp, Lp), 1)
            s = jnp.where(col < lk, s, NEG_BIG)
        m = jnp.max(s, axis=-1, keepdims=True)
        e = jnp.exp(s - m)
        p = e * pl.reciprocal(jnp.sum(e, axis=-1, keepdims=True), approx=True)
        # write this head's context straight into its column slab.
        ctx_ref[:, sl] = jnp.dot(p.astype(jnp.bfloat16), vh,
                                 preferred_element_type=jnp.float32)
    # single K=D projection matmul over the assembled context slab.
    attn = jnp.dot(ctx_ref[...].astype(jnp.bfloat16), pw_ref[0],
                   preferred_element_type=jnp.float32) + pb
    x = x + attn

    # ---- mlp branch: x + fc2(gelu(fc1(norm2(x)))) ----
    h2 = _layernorm(x, n2w, n2b).astype(jnp.bfloat16)
    h2 = jnp.dot(h2, f1w_ref[0], preferred_element_type=jnp.float32) + f1b
    h2 = _gelu_exact(h2).astype(jnp.bfloat16)
    h2 = jnp.dot(h2, f2w_ref[0], preferred_element_type=jnp.float32) + f2b
    x = x + h2

    act_ref[b] = x
    # keep the output block defined at every step (cheap VMEM store); the final
    # LayerNorm overwrites it on the last layer before the HBM writeback.
    o_ref[0] = x

    @pl.when(layer == last_layer)
    def _():
        o_ref[0] = _layernorm(x, fnw_ref[...], fnb_ref[...])


# ------------------------------ pallas wrapper ------------------------------ #
def run_encoder(x, pos, params, num_heads):
    B, Lk, D = x.shape
    depth = params['qkvw'].shape[0]

    # pad kept-token count to a sublane multiple (zeros; K rows masked in-kernel)
    Lp = -(-Lk // 8) * 8
    # TODO(synk): if Lk is near a multiple of 128, pad all the way to 128 lanes.
    if Lp != Lk:
        pad = ((0, 0), (0, Lp - Lk), (0, 0))
        x = jnp.pad(x, pad)
        pos = jnp.pad(pos, pad)

    def tok_spec():
        return pl.BlockSpec((1, Lp, D), lambda l, b: (b, 0, 0))

    def layer_spec(shape):           # stacked per-layer weight: stream layer l
        nd = len(shape)
        return pl.BlockSpec((1,) + tuple(shape[1:]),
                            lambda l, b, _nd=nd: (l,) + (0,) * (_nd - 1))

    def full_spec(shape):            # final-norm params: whole array
        nd = len(shape)
        return pl.BlockSpec(tuple(shape), lambda l, b, _nd=nd: (0,) * _nd)

    in_specs = [tok_spec(), tok_spec(),
                layer_spec(params['qkvw'].shape),
                layer_spec(params['pw'].shape),
                layer_spec(params['f1w'].shape),
                layer_spec(params['f2w'].shape),
                layer_spec(params['vecs'].shape),
                full_spec(params['norm_w'].shape),
                full_spec(params['norm_b'].shape)]

    # NOTE: for large B, tile the batch axis (Bt) so the (B, Lp, D) activation
    # scratch stays within the per-generation VMEM budget; on v7x (2 TCs) also
    # ensure >= 2 batch (or Q-row) tiles so the second core gets work.
    out = pl.pallas_call(
        functools.partial(encoder_kernel, num_heads=num_heads, lk=Lk),
        out_shape=jax.ShapeDtypeStruct((B, Lp, D), jnp.float32),
        grid=(depth, B),
        in_specs=in_specs,
        out_specs=pl.BlockSpec((1, Lp, D), lambda l, b: (b, 0, 0)),
        scratch_shapes=[pltpu.VMEM((B, Lp, D), jnp.float32),   # activations
                        pltpu.VMEM((Lp, D), jnp.float32)],     # per-layer ctx
        compiler_params=pltpu.CompilerParams(
            dimension_semantics=("arbitrary", "arbitrary"),
            vmem_limit_bytes=48 * 1024 * 1024),
    )(x, pos, params['qkvw'], params['pw'], params['f1w'], params['f2w'],
      params['vecs'], params['norm_w'], params['norm_b'])
    return out[:, :Lk, :]


# --------------------------- parameters (deterministic) --------------------- #
def build_3d_sincos_position_embedding(grid_size, embed_dim, temperature=10000.0):
    h = w = d = grid_size
    gh = jnp.arange(h, dtype=jnp.float32)
    gw = jnp.arange(w, dtype=jnp.float32)
    gd = jnp.arange(d, dtype=jnp.float32)
    gh, gw, gd = jnp.meshgrid(gh, gw, gd, indexing='ij')
    assert embed_dim % 6 == 0
    pos_dim = embed_dim // 6
    omega = jnp.arange(pos_dim, dtype=jnp.float32) / pos_dim
    omega = 1.0 / temperature ** omega
    out_h = jnp.einsum('m,d->md', gh.flatten(), omega)
    out_w = jnp.einsum('m,d->md', gw.flatten(), omega)
    out_d = jnp.einsum('m,d->md', gd.flatten(), omega)
    pe = jnp.concatenate([jnp.sin(out_h), jnp.cos(out_h),
                          jnp.sin(out_w), jnp.cos(out_w),
                          jnp.sin(out_d), jnp.cos(out_d)], axis=1)[None, :, :]
    return pe.astype(jnp.float32)


def xavier_uniform(key, fan_in, fan_out):
    limit = float(np.sqrt(6.0 / (fan_in + fan_out)))
    # stored as (in, out) so kernels do x @ W without a transpose
    return jax.random.uniform(key, (fan_in, fan_out), jnp.float32, -limit, limit)


def init_params(key, grid_size, embed_dim, depth, num_heads, mlp_ratio):
    D = embed_dim
    Dh = int(D * mlp_ratio)
    assert D % num_heads == 0, "embed_dim must be divisible by num_heads"
    Vw = max(3 * D, Dh)     # lane width of the coalesced vector-parameter slab

    qkvw, pw, f1w, f2w, vecs = [], [], [], [], []
    for i in range(depth):
        k = jax.random.fold_in(key, i)
        k1, k2, k3, k4 = jax.random.split(k, 4)
        qkvw.append(xavier_uniform(k1, D, 3 * D).astype(jnp.bfloat16))   # (D, 3D)
        pw.append(xavier_uniform(k2, D, D).astype(jnp.bfloat16))         # (D, D)
        f1w.append(xavier_uniform(k3, D, Dh).astype(jnp.bfloat16))       # (D, Dh)
        f2w.append(xavier_uniform(k4, Dh, D).astype(jnp.bfloat16))       # (Dh, D)
        # rows: 0 n1w | 1 n1b | 2 qkvb | 3 pb | 4 n2w | 5 n2b | 6 f1b | 7 f2b
        v = np.zeros((8, Vw), np.float32)
        v[0, :D] = 1.0   # norm1.weight
        v[4, :D] = 1.0   # norm2.weight  (all biases are zero per torch init)
        vecs.append(jnp.asarray(v))

    return dict(
        pos_embed=build_3d_sincos_position_embedding(grid_size, D),
        mask_token=0.02 * jax.random.normal(jax.random.fold_in(key, 10_000),
                                            (1, 1, D), jnp.float32),
        norm_w=jnp.ones((1, D), jnp.float32),
        norm_b=jnp.zeros((1, D), jnp.float32),
        qkvw=jnp.stack(qkvw), pw=jnp.stack(pw),
        f1w=jnp.stack(f1w), f2w=jnp.stack(f2w),
        vecs=jnp.stack(vecs),
    )


# -------------------- masking glue (mirrors PyTorch exactly) ---------------- #
def random_masking(x, active_b1fff_np):
    # TODO(synk): argsort/gather token shuffling stays in plain JAX (no clean Pallas equiv.)
    N, L, Dm = x.shape
    mask = jnp.asarray(active_b1fff_np, jnp.int32).reshape(N, 1, -1).transpose(0, 2, 1)  # (N,L,1)
    noise = 1 - mask
    len_keep = int(np.sum(np.asarray(active_b1fff_np, np.int64)))
    indices = jnp.arange(noise.shape[1]).reshape(N, -1, 1)   # faithful to reference (N==1)
    noise = noise * 10000 + indices
    ids_shuffle = jnp.argsort(noise, axis=1)
    ids_restore = jnp.argsort(ids_shuffle, axis=1)
    ids_keep = ids_shuffle[:, :len_keep]
    x_masked = jnp.take_along_axis(x, jnp.tile(ids_keep, (1, 1, Dm)), axis=1)
    return x_masked, mask, ids_restore, ids_keep


def unmasking(x, ids_restore, mask_token):
    B, Lk, D = x.shape
    L = ids_restore.shape[1]
    mask_tokens = jnp.tile(mask_token, (B, L - Lk, 1))
    x_ = jnp.concatenate([x, mask_tokens], axis=1)
    return jnp.take_along_axis(x_, jnp.tile(ids_restore, (1, 1, D)), axis=1)


# ---------------------------------- forward --------------------------------- #
def forward(params, imgs, active_b1fff_np, num_heads):
    B, C, H, W, Dd = imgs.shape
    x = imgs.reshape(B, C, H * W * Dd).transpose(0, 2, 1)          # (B, L, C)
    # token shuffle (sparse=True path). The "+ pos_embed" that the reference
    # applies before masking is fused into layer 0 of the Pallas kernel; this
    # is exact because the gather commutes with the elementwise add.
    x_masked, _mask, ids_restore, ids_keep = random_masking(x, active_b1fff_np)
    pos = jnp.broadcast_to(params['pos_embed'],
                           (B,) + params['pos_embed'].shape[1:])
    pos_masked = jnp.take_along_axis(pos, jnp.tile(ids_keep, (1, 1, C)), axis=1)

    x = run_encoder(x_masked, pos_masked, params, num_heads)       # fused blocks + final LN
    x = unmasking(x, ids_restore, params['mask_token'])
    return x.transpose(0, 2, 1).reshape(B, C, H, W, Dd)


# ------------------------------------ main ---------------------------------- #
if __name__ == "__main__":
    # Small config consistent with the module: img_size=32, downsample=16 -> grid=2,
    # embed_dim=48 (divisible by 6 and by num_heads), depth=2, heads=4, mlp_ratio=4.
    # B=1: the reference random_masking's indices reshape only broadcasts for batch 1.
    B = 1
    embed_dim = 48
    grid_size = 2
    depth = 2
    num_heads = 4
    mlp_ratio = 4.0
    H = W = Dd = grid_size
    L = grid_size ** 3

    assert embed_dim % 6 == 0
    assert embed_dim % num_heads == 0

    key = jax.random.PRNGKey(0)
    kp, ki, km = jax.random.split(key, 3)
    params = init_params(kp, grid_size, embed_dim, depth, num_heads, mlp_ratio)

    imgs = jax.random.normal(ki, (B, embed_dim, H, W, Dd), jnp.float32)

    # active mask like the `mask()` helper: keep 50% of tokens per sample.
    len_keep = round(L * 0.5)
    noise = np.asarray(jax.random.uniform(km, (B, L)))
    keep_idx = np.argsort(noise, axis=1)[:, :len_keep]
    active = np.zeros((B, L), dtype=bool)
    active[np.arange(B)[:, None], keep_idx] = True
    active_b1fff = active.reshape(B, 1, H, W, Dd)

    out = forward(params, imgs, active_b1fff, num_heads)
    out = jax.block_until_ready(out)
    assert out.shape == (B, embed_dim, H, W, Dd), out.shape
    assert bool(jnp.all(jnp.isfinite(out)))
    print("KERNEL_OK")
</pallas_src>

<mosaic_0001>
module attributes {stable_mosaic.version = 11 : i64} {
  func.func @encoder_kernel(%arg0: i32, %arg1: i32, %arg2: memref<1x8x48xf32, #tpu.memory_space<vmem>>, %arg3: memref<1x8x48xf32, #tpu.memory_space<vmem>>, %arg4: memref<1x48x144xbf16, #tpu.memory_space<vmem>>, %arg5: memref<1x48x48xbf16, #tpu.memory_space<vmem>>, %arg6: memref<1x48x192xbf16, #tpu.memory_space<vmem>>, %arg7: memref<1x192x48xbf16, #tpu.memory_space<vmem>>, %arg8: memref<1x8x192xf32, #tpu.memory_space<vmem>>, %arg9: memref<1x48xf32, #tpu.memory_space<vmem>>, %arg10: memref<1x48xf32, #tpu.memory_space<vmem>>, %arg11: memref<1x8x48xf32, #tpu.memory_space<vmem>>, %arg12: memref<1x8x48xf32, #tpu.memory_space<vmem>>, %arg13: memref<8x48xf32, #tpu.memory_space<vmem>>) attributes {dimension_semantics = [#tpu.dimension_semantics<arbitrary>, #tpu.dimension_semantics<arbitrary>], iteration_bounds = array<i64: 2, 1>, scalar_prefetch = 0 : i64, scratch_operands = 2 : i64, tpu.core_type = #tpu.core_type<tc>, window_params = [{transform_indices = @transform_0, window_bounds = array<i64: 1, 8, 48>}, {transform_indices = @transform_1, window_bounds = array<i64: 1, 8, 48>}, {transform_indices = @transform_2, window_bounds = array<i64: 1, 48, 144>}, {transform_indices = @transform_3, window_bounds = array<i64: 1, 48, 48>}, {transform_indices = @transform_4, window_bounds = array<i64: 1, 48, 192>}, {transform_indices = @transform_5, window_bounds = array<i64: 1, 192, 48>}, {transform_indices = @transform_6, window_bounds = array<i64: 1, 8, 192>}, {pipeline_mode = #tpu.pipeline_mode<synchronous>, transform_indices = @transform_7, window_bounds = array<i64: 1, 48>}, {pipeline_mode = #tpu.pipeline_mode<synchronous>, transform_indices = @transform_8, window_bounds = array<i64: 1, 48>}, {transform_indices = @transform_9, window_bounds = array<i64: 1, 8, 48>}]} {
    %c0_i32 = arith.constant 0 : i32
    %0 = arith.cmpi eq, %arg0, %c0_i32 : i32
    %1 = arith.extui %0 : i1 to i32
    %c0_i32_0 = arith.constant 0 : i32
    %2 = arith.cmpi ne, %1, %c0_i32_0 : i32
    scf.if %2 {
      %c0_87 = arith.constant 0 : index
      %c0_88 = arith.constant 0 : index
      %c0_89 = arith.constant 0 : index
      %222 = vector.load %arg2[%c0_87, %c0_88, %c0_89] : memref<1x8x48xf32, #tpu.memory_space<vmem>>, vector<1x8x48xf32>
      %223 = vector.shape_cast %222 : vector<1x8x48xf32> to vector<8x48xf32>
      %c0_90 = arith.constant 0 : index
      %c0_91 = arith.constant 0 : index
      %c0_92 = arith.constant 0 : index
      %224 = vector.load %arg3[%c0_90, %c0_91, %c0_92] : memref<1x8x48xf32, #tpu.memory_space<vmem>>, vector<1x8x48xf32>
      %225 = vector.shape_cast %224 : vector<1x8x48xf32> to vector<8x48xf32>
      %226 = arith.addf %223, %225 : vector<8x48xf32>
      %227 = arith.index_cast %arg1 : i32 to index
      %c0_93 = arith.constant 0 : index
      %c0_94 = arith.constant 0 : index
      %228 = vector.load %arg12[%227, %c0_93, %c0_94] : memref<1x8x48xf32, #tpu.memory_space<vmem>>, vector<1x8x48xf32>
      %229 = vector.shape_cast %228 : vector<1x8x48xf32> to vector<8x48xf32>
      %230 = vector.shape_cast %226 : vector<8x48xf32> to vector<1x8x48xf32>
      tpu.vector_store %arg12[%227, %c0_93, %c0_94], %230 {strides = array<i32>} : memref<1x8x48xf32, #tpu.memory_space<vmem>>, vector<1x8x48xf32>,
    } else {
    }
    %3 = arith.index_cast %arg1 : i32 to index
    %c0 = arith.constant 0 : index
    %c0_1 = arith.constant 0 : index
    %4 = vector.load %arg12[%3, %c0, %c0_1] : memref<1x8x48xf32, #tpu.memory_space<vmem>>, vector<1x8x48xf32>
    %5 = vector.shape_cast %4 : vector<1x8x48xf32> to vector<8x48xf32>
    %c0_2 = arith.constant 0 : index
    %c0_3 = arith.constant 0 : index
    %c0_4 = arith.constant 0 : index
    %6 = vector.load %arg8[%c0_2, %c0_3, %c0_4] : memref<1x8x192xf32, #tpu.memory_space<vmem>>, vector<1x1x48xf32>
    %7 = vector.shape_cast %6 : vector<1x1x48xf32> to vector<1x48xf32>
    %c0_5 = arith.constant 0 : index
    %c1 = arith.constant 1 : index
    %c0_6 = arith.constant 0 : index
    %8 = vector.load %arg8[%c0_5, %c1, %c0_6] : memref<1x8x192xf32, #tpu.memory_space<vmem>>, vector<1x1x48xf32>
    %9 = vector.shape_cast %8 : vector<1x1x48xf32> to vector<1x48xf32>
    %c0_7 = arith.constant 0 : index
    %c2 = arith.constant 2 : index
    %c0_8 = arith.constant 0 : index
    %10 = vector.load %arg8[%c0_7, %c2, %c0_8] : memref<1x8x192xf32, #tpu.memory_space<vmem>>, vector<1x1x144xf32>
    %11 = vector.shape_cast %10 : vector<1x1x144xf32> to vector<1x144xf32>
    %c0_9 = arith.constant 0 : index
    %c3 = arith.constant 3 : index
    %c0_10 = arith.constant 0 : index
    %12 = vector.load %arg8[%c0_9, %c3, %c0_10] : memref<1x8x192xf32, #tpu.memory_space<vmem>>, vector<1x1x48xf32>
    %13 = vector.shape_cast %12 : vector<1x1x48xf32> to vector<1x48xf32>
    %c0_11 = arith.constant 0 : index
    %c4 = arith.constant 4 : index
    %c0_12 = arith.constant 0 : index
    %14 = vector.load %arg8[%c0_11, %c4, %c0_12] : memref<1x8x192xf32, #tpu.memory_space<vmem>>, vector<1x1x48xf32>
    %15 = vector.shape_cast %14 : vector<1x1x48xf32> to vector<1x48xf32>
    %c0_13 = arith.constant 0 : index
    %c5 = arith.constant 5 : index
    %c0_14 = arith.constant 0 : index
    %16 = vector.load %arg8[%c0_13, %c5, %c0_14] : memref<1x8x192xf32, #tpu.memory_space<vmem>>, vector<1x1x48xf32>
    %17 = vector.shape_cast %16 : vector<1x1x48xf32> to vector<1x48xf32>
    %c0_15 = arith.constant 0 : index
    %c6 = arith.constant 6 : index
    %c0_16 = arith.constant 0 : index
    %18 = vector.load %arg8[%c0_15, %c6, %c0_16] : memref<1x8x192xf32, #tpu.memory_space<vmem>>, vector<1x1x192xf32>
    %19 = vector.shape_cast %18 : vector<1x1x192xf32> to vector<1x192xf32>
    %c0_17 = arith.constant 0 : index
    %c7 = arith.constant 7 : index
    %c0_18 = arith.constant 0 : index
    %20 = vector.load %arg8[%c0_17, %c7, %c0_18] : memref<1x8x192xf32, #tpu.memory_space<vmem>>, vector<1x1x48xf32>
    %21 = vector.shape_cast %20 : vector<1x1x48xf32> to vector<1x48xf32>
    %cst = arith.constant dense<0.000000e+00> : vector<8xf32>
    %22 = vector.multi_reduction <add>, %5, %cst [1] : vector<8x48xf32> to vector<8xf32>
    %23 = vector.shape_cast %22 : vector<8xf32> to vector<8x1xf32>
    %cst_19 = arith.constant 4.800000e+01 : f32
    %24 = vector.broadcast %cst_19 : f32 to vector<8x1xf32>
    %25 = arith.divf %23, %24 : vector<8x1xf32>
    %26 = vector.broadcast %25 : vector<8x1xf32> to vector<8x48xf32>
    %27 = arith.subf %5, %26 : vector<8x48xf32>
    %28 = arith.mulf %27, %27 : vector<8x48xf32>
    %cst_20 = arith.constant dense<0.000000e+00> : vector<8xf32>
    %29 = vector.multi_reduction <add>, %28, %cst_20 [1] : vector<8x48xf32> to vector<8xf32>
    %30 = vector.shape_cast %29 : vector<8xf32> to vector<8x1xf32>
    %cst_21 = arith.constant 4.800000e+01 : f32
    %31 = vector.broadcast %cst_21 : f32 to vector<8x1xf32>
    %32 = arith.divf %30, %31 : vector<8x1xf32>
    %33 = vector.broadcast %25 : vector<8x1xf32> to vector<8x48xf32>
    %34 = arith.subf %5, %33 : vector<8x48xf32>
    %cst_22 = arith.constant 9.99999974E-6 : f32
    %35 = vector.broadcast %cst_22 : f32 to vector<8x1xf32>
    %36 = arith.addf %32, %35 : vector<8x1xf32>
    %37 = math.rsqrt %36 : vector<8x1xf32>
    %38 = vector.broadcast %37 : vector<8x1xf32> to vector<8x48xf32>
    %39 = arith.mulf %34, %38 : vector<8x48xf32>
    %40 = vector.broadcast %7 : vector<1x48xf32> to vector<8x48xf32>
    %41 = arith.mulf %39, %40 : vector<8x48xf32>
    %42 = vector.broadcast %9 : vector<1x48xf32> to vector<8x48xf32>
    %43 = arith.addf %41, %42 : vector<8x48xf32>
    %44 = arith.truncf %43 : vector<8x48xf32> to vector<8x48xbf16>
    %c0_23 = arith.constant 0 : index
    %c0_24 = arith.constant 0 : index
    %c0_25 = arith.constant 0 : index
    %45 = vector.load %arg4[%c0_23, %c0_24, %c0_25] : memref<1x48x144xbf16, #tpu.memory_space<vmem>>, vector<1x48x144xbf16>
    %46 = vector.shape_cast %45 : vector<1x48x144xbf16> to vector<48x144xbf16>
    %cst_26 = arith.constant dense<0.000000e+00> : vector<8x144xf32>
    %47 = tpu.matmul %44, %46, %cst_26 {dimension_numbers = #tpu.dot_dimension_numbers<[1], [0], [0], [1], [0, 0, 1, 1], [], []>} : vector<8x48xbf16>, vector<48x144xbf16>, vector<8x144xf32> -> vector<8x144xf32>
    %48 = vector.broadcast %11 : vector<1x144xf32> to vector<8x144xf32>
    %49 = arith.addf %47, %48 : vector<8x144xf32>
    %50 = vector.extract_strided_slice %49 {offsets = [0, 0], sizes = [8, 48], strides = [1, 1]} : vector<8x144xf32> to vector<8x48xf32>
    %51 = vector.extract_strided_slice %49 {offsets = [0, 48], sizes = [8, 48], strides = [1, 1]} : vector<8x144xf32> to vector<8x48xf32>
    %52 = vector.extract_strided_slice %49 {offsets = [0, 96], sizes = [8, 48], strides = [1, 1]} : vector<8x144xf32> to vector<8x48xf32>
    %53 = vector.extract_strided_slice %50 {offsets = [0, 0], sizes = [8, 12], strides = [1, 1]} : vector<8x48xf32> to vector<8x12xf32>
    %54 = arith.truncf %53 : vector<8x12xf32> to vector<8x12xbf16>
    %55 = vector.extract_strided_slice %51 {offsets = [0, 0], sizes = [8, 12], strides = [1, 1]} : vector<8x48xf32> to vector<8x12xf32>
    %56 = arith.truncf %55 : vector<8x12xf32> to vector<8x12xbf16>
    %57 = vector.extract_strided_slice %52 {offsets = [0, 0], sizes = [8, 12], strides = [1, 1]} : vector<8x48xf32> to vector<8x12xf32>
    %58 = arith.truncf %57 : vector<8x12xf32> to vector<8x12xbf16>
    %cst_27 = arith.constant dense<0.000000e+00> : vector<8x8xf32>
    %59 = tpu.matmul %54, %56, %cst_27 {dimension_numbers = #tpu.dot_dimension_numbers<[1], [1], [0], [0], [0, 0, 1, 0], [], []>} : vector<8x12xbf16>, vector<8x12xbf16>, vector<8x8xf32> -> vector<8x8xf32>
    %cst_28 = arith.constant 0.288675129 : f32
    %60 = vector.broadcast %cst_28 : f32 to vector<8x8xf32>
    %61 = arith.mulf %59, %60 : vector<8x8xf32>
    %62 = tpu.iota {dimensions = array<i32: 1>} : vector<8x8xi32>
    %c4_i32 = arith.constant 4 : i32
    %63 = vector.broadcast %c4_i32 : i32 to vector<8x8xi32>
    %64 = arith.cmpi slt, %62, %63 : vector<8x8xi32>
    %cst_29 = arith.constant -1.000000e+30 : f32
    %65 = vector.broadcast %cst_29 : f32 to vector<8x8xf32>
    %66 = arith.select %64, %61, %65 : vector<8x8xi1>, vector<8x8xf32>
    %cst_30 = arith.constant dense<0xFF800000> : vector<8xf32>
    %67 = vector.multi_reduction <maximumf>, %66, %cst_30 [1] : vector<8x8xf32> to vector<8xf32>
    %68 = vector.shape_cast %67 : vector<8xf32> to vector<8x1xf32>
    %69 = vector.broadcast %68 : vector<8x1xf32> to vector<8x8xf32>
    %70 = arith.subf %66, %69 : vector<8x8xf32>
    %71 = math.exp %70 : vector<8x8xf32>
    %cst_31 = arith.constant dense<0.000000e+00> : vector<8xf32>
    %72 = vector.multi_reduction <add>, %71, %cst_31 [1] : vector<8x8xf32> to vector<8xf32>
    %73 = vector.shape_cast %72 : vector<8xf32> to vector<8x1xf32>
    %74 = tpu.reciprocal %73 {approx = true} : vector<8x1xf32> -> vector<8x1xf32>
    %75 = vector.broadcast %74 : vector<8x1xf32> to vector<8x8xf32>
    %76 = arith.mulf %71, %75 : vector<8x8xf32>
    %77 = arith.truncf %76 : vector<8x8xf32> to vector<8x8xbf16>
    %cst_32 = arith.constant dense<0.000000e+00> : vector<8x12xf32>
    %78 = tpu.matmul %77, %58, %cst_32 {dimension_numbers = #tpu.dot_dimension_numbers<[1], [0], [0], [1], [0, 0, 1, 1], [], []>} : vector<8x8xbf16>, vector<8x12xbf16>, vector<8x12xf32> -> vector<8x12xf32>
    %c0_33 = arith.constant 0 : index
    %c0_34 = arith.constant 0 : index
    %79 = vector.load %arg13[%c0_33, %c0_34] : memref<8x48xf32, #tpu.memory_space<vmem>>, vector<8x12xf32>
    tpu.vector_store %arg13[%c0_33, %c0_34], %78 {strides = array<i32>} : memref<8x48xf32, #tpu.memory_space<vmem>>, vector<8x12xf32>,
    %80 = vector.extract_strided_slice %50 {offsets = [0, 12], sizes = [8, 12], strides = [1, 1]} : vector<8x48xf32> to vector<8x12xf32>
    %81 = arith.truncf %80 : vector<8x12xf32> to vector<8x12xbf16>
    %82 = vector.extract_strided_slice %51 {offsets = [0, 12], sizes = [8, 12], strides = [1, 1]} : vector<8x48xf32> to vector<8x12xf32>
    %83 = arith.truncf %82 : vector<8x12xf32> to vector<8x12xbf16>
    %84 = vector.extract_strided_slice %52 {offsets = [0, 12], sizes = [8, 12], strides = [1, 1]} : vector<8x48xf32> to vector<8x12xf32>
    %85 = arith.truncf %84 : vector<8x12xf32> to vector<8x12xbf16>
    %cst_35 = arith.constant dense<0.000000e+00> : vector<8x8xf32>
    %86 = tpu.matmul %81, %83, %cst_35 {dimension_numbers = #tpu.dot_dimension_numbers<[1], [1], [0], [0], [0, 0, 1, 0], [], []>} : vector<8x12xbf16>, vector<8x12xbf16>, vector<8x8xf32> -> vector<8x8xf32>
    %cst_36 = arith.constant 0.288675129 : f32
    %87 = vector.broadcast %cst_36 : f32 to vector<8x8xf32>
    %88 = arith.mulf %86, %87 : vector<8x8xf32>
    %89 = tpu.iota {dimensions = array<i32: 1>} : vector<8x8xi32>
    %c4_i32_37 = arith.constant 4 : i32
    %90 = vector.broadcast %c4_i32_37 : i32 to vector<8x8xi32>
    %91 = arith.cmpi slt, %89, %90 : vector<8x8xi32>
    %cst_38 = arith.constant -1.000000e+30 : f32
    %92 = vector.broadcast %cst_38 : f32 to vector<8x8xf32>
    %93 = arith.select %91, %88, %92 : vector<8x8xi1>, vector<8x8xf32>
    %cst_39 = arith.constant dense<0xFF800000> : vector<8xf32>
    %94 = vector.multi_reduction <maximumf>, %93, %cst_39 [1] : vector<8x8xf32> to vector<8xf32>
    %95 = vector.shape_cast %94 : vector<8xf32> to vector<8x1xf32>
    %96 = vector.broadcast %95 : vector<8x1xf32> to vector<8x8xf32>
    %97 = arith.subf %93, %96 : vector<8x8xf32>
    %98 = math.exp %97 : vector<8x8xf32>
    %cst_40 = arith.constant dense<0.000000e+00> : vector<8xf32>
    %99 = vector.multi_reduction <add>, %98, %cst_40 [1] : vector<8x8xf32> to vector<8xf32>
    %100 = vector.shape_cast %99 : vector<8xf32> to vector<8x1xf32>
    %101 = tpu.reciprocal %100 {approx = true} : vector<8x1xf32> -> vector<8x1xf32>
    %102 = vector.broadcast %101 : vector<8x1xf32> to vector<8x8xf32>
    %103 = arith.mulf %98, %102 : vector<8x8xf32>
    %104 = arith.truncf %103 : vector<8x8xf32> to vector<8x8xbf16>
    %cst_41 = arith.constant dense<0.000000e+00> : vector<8x12xf32>
    %105 = tpu.matmul %104, %85, %cst_41 {dimension_numbers = #tpu.dot_dimension_numbers<[1], [0], [0], [1], [0, 0, 1, 1], [], []>} : vector<8x8xbf16>, vector<8x12xbf16>, vector<8x12xf32> -> vector<8x12xf32>
    %c0_42 = arith.constant 0 : index
    %c12 = arith.constant 12 : index
    %106 = vector.load %arg13[%c0_42, %c12] : memref<8x48xf32, #tpu.memory_space<vmem>>, vector<8x12xf32>
    tpu.vector_store %arg13[%c0_42, %c12], %105 {strides = array<i32>} : memref<8x48xf32, #tpu.memory_space<vmem>>, vector<8x12xf32>,
    %107 = vector.extract_strided_slice %50 {offsets = [0, 24], sizes = [8, 12], strides = [1, 1]} : vector<8x48xf32> to vector<8x12xf32>
    %108 = arith.truncf %107 : vector<8x12xf32> to vector<8x12xbf16>
    %109 = vector.extract_strided_slice %51 {offsets = [0, 24], sizes = [8, 12], strides = [1, 1]} : vector<8x48xf32> to vector<8x12xf32>
    %110 = arith.truncf %109 : vector<8x12xf32> to vector<8x12xbf16>
    %111 = vector.extract_strided_slice %52 {offsets = [0, 24], sizes = [8, 12], strides = [1, 1]} : vector<8x48xf32> to vector<8x12xf32>
    %112 = arith.truncf %111 : vector<8x12xf32> to vector<8x12xbf16>
    %cst_43 = arith.constant dense<0.000000e+00> : vector<8x8xf32>
    %113 = tpu.matmul %108, %110, %cst_43 {dimension_numbers = #tpu.dot_dimension_numbers<[1], [1], [0], [0], [0, 0, 1, 0], [], []>} : vector<8x12xbf16>, vector<8x12xbf16>, vector<8x8xf32> -> vector<8x8xf32>
    %cst_44 = arith.constant 0.288675129 : f32
    %114 = vector.broadcast %cst_44 : f32 to vector<8x8xf32>
    %115 = arith.mulf %113, %114 : vector<8x8xf32>
    %116 = tpu.iota {dimensions = array<i32: 1>} : vector<8x8xi32>
    %c4_i32_45 = arith.constant 4 : i32
    %117 = vector.broadcast %c4_i32_45 : i32 to vector<8x8xi32>
    %118 = arith.cmpi slt, %116, %117 : vector<8x8xi32>
    %cst_46 = arith.constant -1.000000e+30 : f32
    %119 = vector.broadcast %cst_46 : f32 to vector<8x8xf32>
    %120 = arith.select %118, %115, %119 : vector<8x8xi1>, vector<8x8xf32>
    %cst_47 = arith.constant dense<0xFF800000> : vector<8xf32>
    %121 = vector.multi_reduction <maximumf>, %120, %cst_47 [1] : vector<8x8xf32> to vector<8xf32>
    %122 = vector.shape_cast %121 : vector<8xf32> to vector<8x1xf32>
    %123 = vector.broadcast %122 : vector<8x1xf32> to vector<8x8xf32>
    %124 = arith.subf %120, %123 : vector<8x8xf32>
    %125 = math.exp %124 : vector<8x8xf32>
    %cst_48 = arith.constant dense<0.000000e+00> : vector<8xf32>
    %126 = vector.multi_reduction <add>, %125, %cst_48 [1] : vector<8x8xf32> to vector<8xf32>
    %127 = vector.shape_cast %126 : vector<8xf32> to vector<8x1xf32>
    %128 = tpu.reciprocal %127 {approx = true} : vector<8x1xf32> -> vector<8x1xf32>
    %129 = vector.broadcast %128 : vector<8x1xf32> to vector<8x8xf32>
    %130 = arith.mulf %125, %129 : vector<8x8xf32>
    %131 = arith.truncf %130 : vector<8x8xf32> to vector<8x8xbf16>
    %cst_49 = arith.constant dense<0.000000e+00> : vector<8x12xf32>
    %132 = tpu.matmul %131, %112, %cst_49 {dimension_numbers = #tpu.dot_dimension_numbers<[1], [0], [0], [1], [0, 0, 1, 1], [], []>} : vector<8x8xbf16>, vector<8x12xbf16>, vector<8x12xf32> -> vector<8x12xf32>
    %c0_50 = arith.constant 0 : index
    %c24 = arith.constant 24 : index
    %133 = vector.load %arg13[%c0_50, %c24] : memref<8x48xf32, #tpu.memory_space<vmem>>, vector<8x12xf32>
    tpu.vector_store %arg13[%c0_50, %c24], %132 {strides = array<i32>} : memref<8x48xf32, #tpu.memory_space<vmem>>, vector<8x12xf32>,
    %134 = vector.extract_strided_slice %50 {offsets = [0, 36], sizes = [8, 12], strides = [1, 1]} : vector<8x48xf32> to vector<8x12xf32>
    %135 = arith.truncf %134 : vector<8x12xf32> to vector<8x12xbf16>
    %136 = vector.extract_strided_slice %51 {offsets = [0, 36], sizes = [8, 12], strides = [1, 1]} : vector<8x48xf32> to vector<8x12xf32>
    %137 = arith.truncf %136 : vector<8x12xf32> to vector<8x12xbf16>
    %138 = vector.extract_strided_slice %52 {offsets = [0, 36], sizes = [8, 12], strides = [1, 1]} : vector<8x48xf32> to vector<8x12xf32>
    %139 = arith.truncf %138 : vector<8x12xf32> to vector<8x12xbf16>
    %cst_51 = arith.constant dense<0.000000e+00> : vector<8x8xf32>
    %140 = tpu.matmul %135, %137, %cst_51 {dimension_numbers = #tpu.dot_dimension_numbers<[1], [1], [0], [0], [0, 0, 1, 0], [], []>} : vector<8x12xbf16>, vector<8x12xbf16>, vector<8x8xf32> -> vector<8x8xf32>
    %cst_52 = arith.constant 0.288675129 : f32
    %141 = vector.broadcast %cst_52 : f32 to vector<8x8xf32>
    %142 = arith.mulf %140, %141 : vector<8x8xf32>
    %143 = tpu.iota {dimensions = array<i32: 1>} : vector<8x8xi32>
    %c4_i32_53 = arith.constant 4 : i32
    %144 = vector.broadcast %c4_i32_53 : i32 to vector<8x8xi32>
    %145 = arith.cmpi slt, %143, %144 : vector<8x8xi32>
    %cst_54 = arith.constant -1.000000e+30 : f32
    %146 = vector.broadcast %cst_54 : f32 to vector<8x8xf32>
    %147 = arith.select %145, %142, %146 : vector<8x8xi1>, vector<8x8xf32>
    %cst_55 = arith.constant dense<0xFF800000> : vector<8xf32>
    %148 = vector.multi_reduction <maximumf>, %147, %cst_55 [1] : vector<8x8xf32> to vector<8xf32>
    %149 = vector.shape_cast %148 : vector<8xf32> to vector<8x1xf32>
    %150 = vector.broadcast %149 : vector<8x1xf32> to vector<8x8xf32>
    %151 = arith.subf %147, %150 : vector<8x8xf32>
    %152 = math.exp %151 : vector<8x8xf32>
    %cst_56 = arith.constant dense<0.000000e+00> : vector<8xf32>
    %153 = vector.multi_reduction <add>, %152, %cst_56 [1] : vector<8x8xf32> to vector<8xf32>
    %154 = vector.shape_cast %153 : vector<8xf32> to vector<8x1xf32>
    %155 = tpu.reciprocal %154 {approx = true} : vector<8x1xf32> -> vector<8x1xf32>
    %156 = vector.broadcast %155 : vector<8x1xf32> to vector<8x8xf32>
    %157 = arith.mulf %152, %156 : vector<8x8xf32>
    %158 = arith.truncf %157 : vector<8x8xf32> to vector<8x8xbf16>
    %cst_57 = arith.constant dense<0.000000e+00> : vector<8x12xf32>
    %159 = tpu.matmul %158, %139, %cst_57 {dimension_numbers = #tpu.dot_dimension_numbers<[1], [0], [0], [1], [0, 0, 1, 1], [], []>} : vector<8x8xbf16>, vector<8x12xbf16>, vector<8x12xf32> -> vector<8x12xf32>
    %c0_58 = arith.constant 0 : index
    %c36 = arith.constant 36 : index
    %160 = vector.load %arg13[%c0_58, %c36] : memref<8x48xf32, #tpu.memory_space<vmem>>, vector<8x12xf32>
    tpu.vector_store %arg13[%c0_58, %c36], %159 {strides = array<i32>} : memref<8x48xf32, #tpu.memory_space<vmem>>, vector<8x12xf32>,
    %c0_59 = arith.constant 0 : index
    %c0_60 = arith.constant 0 : index
    %161 = vector.load %arg13[%c0_59, %c0_60] : memref<8x48xf32, #tpu.memory_space<vmem>>, vector<8x48xf32>
    %162 = arith.truncf %161 : vector<8x48xf32> to vector<8x48xbf16>
    %c0_61 = arith.constant 0 : index
    %c0_62 = arith.constant 0 : index
    %c0_63 = arith.constant 0 : index
    %163 = vector.load %arg5[%c0_61, %c0_62, %c0_63] : memref<1x48x48xbf16, #tpu.memory_space<vmem>>, vector<1x48x48xbf16>
    %164 = vector.shape_cast %163 : vector<1x48x48xbf16> to vector<48x48xbf16>
    %cst_64 = arith.constant dense<0.000000e+00> : vector<8x48xf32>
    %165 = tpu.matmul %162, %164, %cst_64 {dimension_numbers = #tpu.dot_dimension_numbers<[1], [0], [0], [1], [0, 0, 1, 1], [], []>} : vector<8x48xbf16>, vector<48x48xbf16>, vector<8x48xf32> -> vector<8x48xf32>
    %166 = vector.broadcast %13 : vector<1x48xf32> to vector<8x48xf32>
    %167 = arith.addf %165, %166 : vector<8x48xf32>
    %168 = arith.addf %5, %167 : vector<8x48xf32>
    %cst_65 = arith.constant dense<0.000000e+00> : vector<8xf32>
    %169 = vector.multi_reduction <add>, %168, %cst_65 [1] : vector<8x48xf32> to vector<8xf32>
    %170 = vector.shape_cast %169 : vector<8xf32> to vector<8x1xf32>
    %cst_66 = arith.constant 4.800000e+01 : f32
    %171 = vector.broadcast %cst_66 : f32 to vector<8x1xf32>
    %172 = arith.divf %170, %171 : vector<8x1xf32>
    %173 = vector.broadcast %172 : vector<8x1xf32> to vector<8x48xf32>
    %174 = arith.subf %168, %173 : vector<8x48xf32>
    %175 = arith.mulf %174, %174 : vector<8x48xf32>
    %cst_67 = arith.constant dense<0.000000e+00> : vector<8xf32>
    %176 = vector.multi_reduction <add>, %175, %cst_67 [1] : vector<8x48xf32> to vector<8xf32>
    %177 = vector.shape_cast %176 : vector<8xf32> to vector<8x1xf32>
    %cst_68 = arith.constant 4.800000e+01 : f32
    %178 = vector.broadcast %cst_68 : f32 to vector<8x1xf32>
    %179 = arith.divf %177, %178 : vector<8x1xf32>
    %180 = vector.broadcast %172 : vector<8x1xf32> to vector<8x48xf32>
    %181 = arith.subf %168, %180 : vector<8x48xf32>
    %cst_69 = arith.constant 9.99999974E-6 : f32
    %182 = vector.broadcast %cst_69 : f32 to vector<8x1xf32>
    %183 = arith.addf %179, %182 : vector<8x1xf32>
    %184 = math.rsqrt %183 : vector<8x1xf32>
    %185 = vector.broadcast %184 : vector<8x1xf32> to vector<8x48xf32>
    %186 = arith.mulf %181, %185 : vector<8x48xf32>
    %187 = vector.broadcast %15 : vector<1x48xf32> to vector<8x48xf32>
    %188 = arith.mulf %186, %187 : vector<8x48xf32>
    %189 = vector.broadcast %17 : vector<1x48xf32> to vector<8x48xf32>
    %190 = arith.addf %188, %189 : vector<8x48xf32>
    %191 = arith.truncf %190 : vector<8x48xf32> to vector<8x48xbf16>
    %c0_70 = arith.constant 0 : index
    %c0_71 = arith.constant 0 : index
    %c0_72 = arith.constant 0 : index
    %192 = vector.load %arg6[%c0_70, %c0_71, %c0_72] : memref<1x48x192xbf16, #tpu.memory_space<vmem>>, vector<1x48x192xbf16>
    %193 = vector.shape_cast %192 : vector<1x48x192xbf16> to vector<48x192xbf16>
    %cst_73 = arith.constant dense<0.000000e+00> : vector<8x192xf32>
    %194 = tpu.matmul %191, %193, %cst_73 {dimension_numbers = #tpu.dot_dimension_numbers<[1], [0], [0], [1], [0, 0, 1, 1], [], []>} : vector<8x48xbf16>, vector<48x192xbf16>, vector<8x192xf32> -> vector<8x192xf32>
    %195 = vector.broadcast %19 : vector<1x192xf32> to vector<8x192xf32>
    %196 = arith.addf %194, %195 : vector<8x192xf32>
    %cst_74 = arith.constant 5.000000e-01 : f32
    %197 = vector.broadcast %cst_74 : f32 to vector<8x192xf32>
    %198 = arith.mulf %197, %196 : vector<8x192xf32>
    %cst_75 = arith.constant 0.707106769 : f32
    %199 = vector.broadcast %cst_75 : f32 to vector<8x192xf32>
    %200 = arith.mulf %196, %199 : vector<8x192xf32>
    %201 = math.erf %200 : vector<8x192xf32>
    %cst_76 = arith.constant 1.000000e+00 : f32
    %202 = vector.broadcast %cst_76 : f32 to vector<8x192xf32>
    %203 = arith.addf %202, %201 : vector<8x192xf32>
    %204 = arith.mulf %198, %203 : vector<8x192xf32>
    %205 = arith.truncf %204 : vector<8x192xf32> to vector<8x192xbf16>
    %c0_77 = arith.constant 0 : index
    %c0_78 = arith.constant 0 : index
    %c0_79 = arith.constant 0 : index
    %206 = vector.load %arg7[%c0_77, %c0_78, %c0_79] : memref<1x192x48xbf16, #tpu.memory_space<vmem>>, vector<1x192x48xbf16>
    %207 = vector.shape_cast %206 : vector<1x192x48xbf16> to vector<192x48xbf16>
    %cst_80 = arith.constant dense<0.000000e+00> : vector<8x48xf32>
    %208 = tpu.matmul %205, %207, %cst_80 {dimension_numbers = #tpu.dot_dimension_numbers<[1], [0], [0], [1], [0, 0, 1, 1], [], []>} : vector<8x192xbf16>, vector<192x48xbf16>, vector<8x48xf32> -> vector<8x48xf32>
    %209 = vector.broadcast %21 : vector<1x48xf32> to vector<8x48xf32>
    %210 = arith.addf %208, %209 : vector<8x48xf32>
    %211 = arith.addf %168, %210 : vector<8x48xf32>
    %212 = arith.index_cast %arg1 : i32 to index
    %c0_81 = arith.constant 0 : index
    %c0_82 = arith.constant 0 : index
    %213 = vector.load %arg12[%212, %c0_81, %c0_82] : memref<1x8x48xf32, #tpu.memory_space<vmem>>, vector<1x8x48xf32>
    %214 = vector.shape_cast %213 : vector<1x8x48xf32> to vector<8x48xf32>
    %215 = vector.shape_cast %211 : vector<8x48xf32> to vector<1x8x48xf32>
    tpu.vector_store %arg12[%212, %c0_81, %c0_82], %215 {strides = array<i32>} : memref<1x8x48xf32, #tpu.memory_space<vmem>>, vector<1x8x48xf32>,
    %c0_83 = arith.constant 0 : index
    %c0_84 = arith.constant 0 : index
    %c0_85 = arith.constant 0 : index
    %216 = vector.load %arg11[%c0_83, %c0_84, %c0_85] : memref<1x8x48xf32, #tpu.memory_space<vmem>>, vector<1x8x48xf32>
    %217 = vector.shape_cast %216 : vector<1x8x48xf32> to vector<8x48xf32>
    %218 = vector.shape_cast %211 : vector<8x48xf32> to vector<1x8x48xf32>
    tpu.vector_store %arg11[%c0_83, %c0_84, %c0_85], %218 {strides = array<i32>} : memref<1x8x48xf32, #tpu.memory_space<vmem>>, vector<1x8x48xf32>,
    %c1_i32 = arith.constant 1 : i32
    %219 = arith.cmpi eq, %arg0, %c1_i32 : i32
    %220 = arith.extui %219 : i1 to i32
    %c0_i32_86 = arith.constant 0 : i32
    %221 = arith.cmpi ne, %220, %c0_i32_86 : i32
    scf.if %221 {
      %c0_87 = arith.constant 0 : index
      %c0_88 = arith.constant 0 : index
      %222 = vector.load %arg9[%c0_87, %c0_88] : memref<1x48xf32, #tpu.memory_space<vmem>>, vector<1x48xf32>
      %c0_89 = arith.constant 0 : index
      %c0_90 = arith.constant 0 : index
      %223 = vector.load %arg10[%c0_89, %c0_90] : memref<1x48xf32, #tpu.memory_space<vmem>>, vector<1x48xf32>
      %cst_91 = arith.constant dense<0.000000e+00> : vector<8xf32>
      %224 = vector.multi_reduction <add>, %211, %cst_91 [1] : vector<8x48xf32> to vector<8xf32>
      %225 = vector.shape_cast %224 : vector<8xf32> to vector<8x1xf32>
      %cst_92 = arith.constant 4.800000e+01 : f32
      %226 = vector.broadcast %cst_92 : f32 to vector<8x1xf32>
      %227 = arith.divf %225, %226 : vector<8x1xf32>
      %228 = vector.broadcast %227 : vector<8x1xf32> to vector<8x48xf32>
      %229 = arith.subf %211, %228 : vector<8x48xf32>
      %230 = arith.mulf %229, %229 : vector<8x48xf32>
      %cst_93 = arith.constant dense<0.000000e+00> : vector<8xf32>
      %231 = vector.multi_reduction <add>, %230, %cst_93 [1] : vector<8x48xf32> to vector<8xf32>
      %232 = vector.shape_cast %231 : vector<8xf32> to vector<8x1xf32>
      %cst_94 = arith.constant 4.800000e+01 : f32
      %233 = vector.broadcast %cst_94 : f32 to vector<8x1xf32>
      %234 = arith.divf %232, %233 : vector<8x1xf32>
      %235 = vector.broadcast %227 : vector<8x1xf32> to vector<8x48xf32>
      %236 = arith.subf %211, %235 : vector<8x48xf32>
      %cst_95 = arith.constant 9.99999974E-6 : f32
      %237 = vector.broadcast %cst_95 : f32 to vector<8x1xf32>
      %238 = arith.addf %234, %237 : vector<8x1xf32>
      %239 = math.rsqrt %238 : vector<8x1xf32>
      %240 = vector.broadcast %239 : vector<8x1xf32> to vector<8x48xf32>
      %241 = arith.mulf %236, %240 : vector<8x48xf32>
      %242 = vector.broadcast %222 : vector<1x48xf32> to vector<8x48xf32>
      %243 = arith.mulf %241, %242 : vector<8x48xf32>
      %244 = vector.broadcast %223 : vector<1x48xf32> to vector<8x48xf32>
      %245 = arith.addf %243, %244 : vector<8x48xf32>
      %c0_96 = arith.constant 0 : index
      %c0_97 = arith.constant 0 : index
      %c0_98 = arith.constant 0 : index
      %246 = vector.load %arg11[%c0_96, %c0_97, %c0_98] : memref<1x8x48xf32, #tpu.memory_space<vmem>>, vector<1x8x48xf32>
      %247 = vector.shape_cast %246 : vector<1x8x48xf32> to vector<8x48xf32>
      %248 = vector.shape_cast %245 : vector<8x48xf32> to vector<1x8x48xf32>
      tpu.vector_store %arg11[%c0_96, %c0_97, %c0_98], %248 {strides = array<i32>} : memref<1x8x48xf32, #tpu.memory_space<vmem>>, vector<1x8x48xf32>,
    } else {
    }
    return
  }
  func.func @transform_0(%arg0: i32, %arg1: i32) -> (i32, i32, i32) {
    %c0_i32 = arith.constant 0 : i32
    %c0_i32_0 = arith.constant 0 : i32
    %c0_i32_1 = arith.constant 0 : i32
    return %arg1, %c0_i32, %c0_i32_0 : i32, i32, i32
  }
  func.func @transform_1(%arg0: i32, %arg1: i32) -> (i32, i32, i32) {
    %c0_i32 = arith.constant 0 : i32
    %c0_i32_0 = arith.constant 0 : i32
    %c0_i32_1 = arith.constant 0 : i32
    return %arg1, %c0_i32, %c0_i32_0 : i32, i32, i32
  }
  func.func @transform_2(%arg0: i32, %arg1: i32) -> (i32, i32, i32) {
    %c0_i32 = arith.constant 0 : i32
    %c0_i32_0 = arith.constant 0 : i32
    %c0_i32_1 = arith.constant 0 : i32
    return %arg0, %c0_i32, %c0_i32_0 : i32, i32, i32
  }
  func.func @transform_3(%arg0: i32, %arg1: i32) -> (i32, i32, i32) {
    %c0_i32 = arith.constant 0 : i32
    %c0_i32_0 = arith.constant 0 : i32
    %c0_i32_1 = arith.constant 0 : i32
    return %arg0, %c0_i32, %c0_i32_0 : i32, i32, i32
  }
  func.func @transform_4(%arg0: i32, %arg1: i32) -> (i32, i32, i32) {
    %c0_i32 = arith.constant 0 : i32
    %c0_i32_0 = arith.constant 0 : i32
    %c0_i32_1 = arith.constant 0 : i32
    return %arg0, %c0_i32, %c0_i32_0 : i32, i32, i32
  }
  func.func @transform_5(%arg0: i32, %arg1: i32) -> (i32, i32, i32) {
    %c0_i32 = arith.constant 0 : i32
    %c0_i32_0 = arith.constant 0 : i32
    %c0_i32_1 = arith.constant 0 : i32
    return %arg0, %c0_i32, %c0_i32_0 : i32, i32, i32
  }
  func.func @transform_6(%arg0: i32, %arg1: i32) -> (i32, i32, i32) {
    %c0_i32 = arith.constant 0 : i32
    %c0_i32_0 = arith.constant 0 : i32
    %c0_i32_1 = arith.constant 0 : i32
    return %arg0, %c0_i32, %c0_i32_0 : i32, i32, i32
  }
  func.func @transform_7(%arg0: i32, %arg1: i32) -> (i32, i32) {
    %c0_i32 = arith.constant 0 : i32
    %c0_i32_0 = arith.constant 0 : i32
    %c0_i32_1 = arith.constant 0 : i32
    return %c0_i32, %c0_i32_0 : i32, i32
  }
  func.func @transform_8(%arg0: i32, %arg1: i32) -> (i32, i32) {
    %c0_i32 = arith.constant 0 : i32
    %c0_i32_0 = arith.constant 0 : i32
    %c0_i32_1 = arith.constant 0 : i32
    return %c0_i32, %c0_i32_0 : i32, i32
  }
  func.func @transform_9(%arg0: i32, %arg1: i32) -> (i32, i32, i32) {
    %c0_i32 = arith.constant 0 : i32
    %c0_i32_0 = arith.constant 0 : i32
    %c0_i32_1 = arith.constant 0 : i32
    return %arg1, %c0_i32, %c0_i32_0 : i32, i32, i32
  }
}

</mosaic_0001>

<llo_original>
// kernel: tpu_custom_call.1
$region0: #{tpu_custom_call.1}
  #allocation0 [shape = 'u32[]', space=smem, size = 0x4, offset = 0x4, fixed_abs, tag = 'smem constant byte address 0x4 - core index']
  #allocation1 [shape = 'u32[144,128]{1,0:T(1,128)}', space=vmem, size = 0x12000, scoped, tag = 'internal scratch']
  #allocation2 [shape = 'f32[1,8,48]{2,1,0:T(8,128)}', space=vmem, size = 0x1000, scoped, tag = 'scratch operand']
  #allocation3 [shape = 'f32[8,48]{1,0:T(8,128)}', space=vmem, size = 0x1000, scoped, tag = 'scratch operand']
  %s0 = inlined_call_operand.vmem [shape: f32[1,8,48], index: 0, kind: input, shape index: {}]
  %s1 = inlined_call_operand.vmem [shape: f32[1,8,48], index: 1, kind: input, shape index: {}]
  %s2 = inlined_call_operand.vmem [shape: bf16[2,48,144], index: 2, kind: input, shape index: {}]
  %s3 = inlined_call_operand.vmem [shape: bf16[2,48,48], index: 3, kind: input, shape index: {}]
  %s4 = inlined_call_operand.vmem [shape: bf16[2,48,192], index: 4, kind: input, shape index: {}]
  %s5 = inlined_call_operand.vmem [shape: bf16[2,192,48], index: 5, kind: input, shape index: {}]
  %s6 = inlined_call_operand.vmem [shape: f32[2,8,192], index: 6, kind: input, shape index: {}]
  %s7 = inlined_call_operand.vmem [shape: f32[1,48], index: 7, kind: input, shape index: {}]
  %s8 = inlined_call_operand.vmem [shape: f32[1,48], index: 8, kind: input, shape index: {}]
  %s9 = inlined_call_operand.hbm [shape: f32[1,8,48], index: 9, kind: output, shape index: {}]
  %s10 = sld [smem:[#allocation0]]
  $region77: #{tpu_custom_call.1} parent=0
    _
  %s12 = ssub.s32 1, %s10
  %s13 = scalar_select 0, %s12, %s10
  $region1: #{tpu_custom_call.1} parent=0
    #allocation4 [shape = 'u8[4096]{0}', space=vmem, size = 0x1000, scoped, tag = 'output window, operand 0, single buffered']
    #allocation5 [shape = 's32[2]{0}', space=sflag, size = 0x8, scoped, tag = 'scoped memory for tpu_custom_call.1']
    %14 = vsyncpa [#allocation5], 0
    loop: start=0, step=1, limit=4
    $region2: #{tpu_custom_call.1} parent=1 // loop_pre_header
      _
    $region3: #{tpu_custom_call.1} parent=1 // loop_header
      %s16 = sphi 0, %s20
      %p17 = scmp.ge.s32.totalorder %s16, 4
      %s23 = sphi 0, %s35
      %s24 = sphi 0, %s31
      %s25 = sphi 0, %s23
      %s26 = sphi 0, %s24
      %s27 = sphi 0, %s25
      %s28 = sphi 0, %s26
      %s38 = sphi 0, %s40
      %s41 = sphi 0, %s38
      %s42 = sphi 0, %s41
      %s58 = sphi 0, %s42
      %s64 = sphi 0, %s66
      %s67 = sphi 0, %s64
      %s68 = sphi 0, %s67
      %s84 = sphi 0, %s68
      %s90 = sphi 0, %s92
      %s93 = sphi 0, %s90
      %s94 = sphi 0, %s93
      %s110 = sphi 0, %s94
      %s116 = sphi 0, %s118
      %s119 = sphi 0, %s116
      %s120 = sphi 0, %s119
      %s136 = sphi 0, %s120
      %s142 = sphi 0, %s144
      %s145 = sphi 0, %s142
      %s146 = sphi 0, %s145
      %s162 = sphi 0, %s146
      %s168 = sphi 0, %s170
      %s171 = sphi 0, %s168
      %s172 = sphi 0, %s171
      %s188 = sphi 0, %s172
      %s194 = sphi 0, %s196
      %s197 = sphi 0, %s194
      %s198 = sphi 0, %s197
      %s214 = sphi 0, %s198
      %s218 = sphi 0, %s218
      %s220 = sphi 0, %s218
      %s221 = sphi 0, %s220
      %s235 = sphi 0, %s221
      %s239 = sphi 0, %s239
      %s241 = sphi 0, %s239
      %s242 = sphi 0, %s241
      %s256 = sphi 0, %s242
      %s262 = sphi 0, %s264
      %s265 = sphi 0, %s262
      %s266 = sphi 0, %s265
      %s282 = sphi 0, %s266
    $region4: #{tpu_custom_call.1} parent=1 // loop_header_branch
      %19 = sbr.rel (%p17) target = $region8
    $region5: #{tpu_custom_call.1} parent=1 // loop_body
      %s21 = ssub.s32 %s16, 1
      %s22 = ssub.s32 %s16, 2
      %s29 = sadd.s32 1, %s24
      %p30 = scmp.ge.s32.totalorder %s29, 1
      %s31 = scalar_select %p30, 0, %s29
      %s32 = sadd.s32 1, %s23
      %s33 = scalar_select %p30, %s32, %s23
      %p34 = scmp.ge.s32.totalorder %s33, 2
      %s35 = scalar_select %p34, 0, %s33
      %s36 = ssub.s32 %s24, %s31
      %p37 = scmp.eq.s32.totalorder %s36, 0
      %s39 = sadd.s32 %s38, 1
      %s40 = scalar_select %p37, %s38, %s39
      %p43 = pneg %p37
      %p44 = scmp.eq.s32.totalorder %s16, 1
      %p45 = por %p43, %p44
      %p46 = scmp.ne.s32.totalorder %s38, %s41
      %p47 = scmp.eq.s32.totalorder %s16, 0
      %p48 = por %p46, %p47
      %p49 = scmp.ne.s32.totalorder %s38, %s41
      %p50 = scmp.eq.s32.totalorder %s21, 1
      %p51 = por %p49, %p50
      %p52 = scmp.ne.s32.totalorder %s41, %s42
      %p53 = scmp.eq.s32.totalorder %s21, 0
      %p54 = por %p52, %p53
      %p55 = scmp.ne.s32.totalorder %s41, %s42
      %p56 = scmp.eq.s32.totalorder %s22, 1
      %p57 = por %p55, %p56
      %p59 = scmp.ne.s32.totalorder %s42, %s58
      %p60 = scmp.eq.s32.totalorder %s22, 0
      %p61 = por %p59, %p60
      %s62 = ssub.s32 %s24, %s31
      %p63 = scmp.eq.s32.totalorder %s62, 0
      %s65 = sadd.s32 %s64, 1
      %s66 = scalar_select %p63, %s64, %s65
      %p69 = pneg %p63
      %p70 = scmp.eq.s32.totalorder %s16, 1
      %p71 = por %p69, %p70
      %p72 = scmp.ne.s32.totalorder %s64, %s67
      %p73 = scmp.eq.s32.totalorder %s16, 0
      %p74 = por %p72, %p73
      %p75 = scmp.ne.s32.totalorder %s64, %s67
      %p76 = scmp.eq.s32.totalorder %s21, 1
      %p77 = por %p75, %p76
      %p78 = scmp.ne.s32.totalorder %s67, %s68
      %p79 = scmp.eq.s32.totalorder %s21, 0
      %p80 = por %p78, %p79
      %p81 = scmp.ne.s32.totalorder %s67, %s68
      %p82 = scmp.eq.s32.totalorder %s22, 1
      %p83 = por %p81, %p82
      %p85 = scmp.ne.s32.totalorder %s68, %s84
      %p86 = scmp.eq.s32.totalorder %s22, 0
      %p87 = por %p85, %p86
      %s88 = ssub.s32 %s23, %s35
      %p89 = scmp.eq.s32.totalorder %s88, 0
      %s91 = sadd.s32 %s90, 1
      %s92 = scalar_select %p89, %s90, %s91
      %p95 = pneg %p89
      %p96 = scmp.eq.s32.totalorder %s16, 1
      %p97 = por %p95, %p96
      %p98 = scmp.ne.s32.totalorder %s90, %s93
      %p99 = scmp.eq.s32.totalorder %s16, 0
      %p100 = por %p98, %p99
      %p101 = scmp.ne.s32.totalorder %s90, %s93
      %p102 = scmp.eq.s32.totalorder %s21, 1
      %p103 = por %p101, %p102
      %p104 = scmp.ne.s32.totalorder %s93, %s94
      %p105 = scmp.eq.s32.totalorder %s21, 0
      %p106 = por %p104, %p105
      %p107 = scmp.ne.s32.totalorder %s93, %s94
      %p108 = scmp.eq.s32.totalorder %s22, 1
      %p109 = por %p107, %p108
      %p111 = scmp.ne.s32.totalorder %s94, %s110
      %p112 = scmp.eq.s32.totalorder %s22, 0
      %p113 = por %p111, %p112
      %s114 = ssub.s32 %s23, %s35
      %p115 = scmp.eq.s32.totalorder %s114, 0
      %s117 = sadd.s32 %s116, 1
      %s118 = scalar_select %p115, %s116, %s117
      %p121 = pneg %p115
      %p122 = scmp.eq.s32.totalorder %s16, 1
      %p123 = por %p121, %p122
      %p124 = scmp.ne.s32.totalorder %s116, %s119
      %p125 = scmp.eq.s32.totalorder %s16, 0
      %p126 = por %p124, %p125
      %p127 = scmp.ne.s32.totalorder %s116, %s119
      %p128 = scmp.eq.s32.totalorder %s21, 1
      %p129 = por %p127, %p128
      %p130 = scmp.ne.s32.totalorder %s119, %s120
      %p131 = scmp.eq.s32.totalorder %s21, 0
      %p132 = por %p130, %p131
      %p133 = scmp.ne.s32.totalorder %s119, %s120
      %p134 = scmp.eq.s32.totalorder %s22, 1
      %p135 = por %p133, %p134
      %p137 = scmp.ne.s32.totalorder %s120, %s136
      %p138 = scmp.eq.s32.totalorder %s22, 0
      %p139 = por %p137, %p138
      %s140 = ssub.s32 %s23, %s35
      %p141 = scmp.eq.s32.totalorder %s140, 0
      %s143 = sadd.s32 %s142, 1
      %s144 = scalar_select %p141, %s142, %s143
      %p147 = pneg %p141
      %p148 = scmp.eq.s32.totalorder %s16, 1
      %p149 = por %p147, %p148
      %p150 = scmp.ne.s32.totalorder %s142, %s145
      %p151 = scmp.eq.s32.totalorder %s16, 0
      %p152 = por %p150, %p151
      %p153 = scmp.ne.s32.totalorder %s142, %s145
      %p154 = scmp.eq.s32.totalorder %s21, 1
      %p155 = por %p153, %p154
      %p156 = scmp.ne.s32.totalorder %s145, %s146
      %p157 = scmp.eq.s32.totalorder %s21, 0
      %p158 = por %p156, %p157
      %p159 = scmp.ne.s32.totalorder %s145, %s146
      %p160 = scmp.eq.s32.totalorder %s22, 1
      %p161 = por %p159, %p160
      %p163 = scmp.ne.s32.totalorder %s146, %s162
      %p164 = scmp.eq.s32.totalorder %s22, 0
      %p165 = por %p163, %p164
      %s166 = ssub.s32 %s23, %s35
      %p167 = scmp.eq.s32.totalorder %s166, 0
      %s169 = sadd.s32 %s168, 1
      %s170 = scalar_select %p167, %s168, %s169
      %p173 = pneg %p167
      %p174 = scmp.eq.s32.totalorder %s16, 1
      %p175 = por %p173, %p174
      %p176 = scmp.ne.s32.totalorder %s168, %s171
      %p177 = scmp.eq.s32.totalorder %s16, 0
      %p178 = por %p176, %p177
      %p179 = scmp.ne.s32.totalorder %s168, %s171
      %p180 = scmp.eq.s32.totalorder %s21, 1
      %p181 = por %p179, %p180
      %p182 = scmp.ne.s32.totalorder %s171, %s172
      %p183 = scmp.eq.s32.totalorder %s21, 0
      %p184 = por %p182, %p183
      %p185 = scmp.ne.s32.totalorder %s171, %s172
      %p186 = scmp.eq.s32.totalorder %s22, 1
      %p187 = por %p185, %p186
      %p189 = scmp.ne.s32.totalorder %s172, %s188
      %p190 = scmp.eq.s32.totalorder %s22, 0
      %p191 = por %p189, %p190
      %s192 = ssub.s32 %s23, %s35
      %p193 = scmp.eq.s32.totalorder %s192, 0
      %s195 = sadd.s32 %s194, 1
      %s196 = scalar_select %p193, %s194, %s195
      %p199 = pneg %p193
      %p200 = scmp.eq.s32.totalorder %s16, 1
      %p201 = por %p199, %p200
      %p202 = scmp.ne.s32.totalorder %s194, %s197
      %p203 = scmp.eq.s32.totalorder %s16, 0
      %p204 = por %p202, %p203
      %p205 = scmp.ne.s32.totalorder %s194, %s197
      %p206 = scmp.eq.s32.totalorder %s21, 1
      %p207 = por %p205, %p206
      %p208 = scmp.ne.s32.totalorder %s197, %s198
      %p209 = scmp.eq.s32.totalorder %s21, 0
      %p210 = por %p208, %p209
      %p211 = scmp.ne.s32.totalorder %s197, %s198
      %p212 = scmp.eq.s32.totalorder %s22, 1
      %p213 = por %p211, %p212
      %p215 = scmp.ne.s32.totalorder %s198, %s214
      %p216 = scmp.eq.s32.totalorder %s22, 0
      %p217 = por %p215, %p216
      %s219 = sadd.s32 %s218, 1
      %p222 = scmp.eq.s32.totalorder %s16, 1
      %p223 = scmp.ne.s32.totalorder %s218, %s220
      %p224 = scmp.eq.s32.totalorder %s16, 0
      %p225 = por %p223, %p224
      %p226 = scmp.ne.s32.totalorder %s218, %s220
      %p227 = scmp.eq.s32.totalorder %s21, 1
      %p228 = por %p226, %p227
      %p229 = scmp.ne.s32.totalorder %s220, %s221
      %p230 = scmp.eq.s32.totalorder %s21, 0
      %p231 = por %p229, %p230
      %p232 = scmp.ne.s32.totalorder %s220, %s221
      %p233 = scmp.eq.s32.totalorder %s22, 1
      %p234 = por %p232, %p233
      %p236 = scmp.ne.s32.totalorder %s221, %s235
      %p237 = scmp.eq.s32.totalorder %s22, 0
      %p238 = por %p236, %p237
      %s240 = sadd.s32 %s239, 1
      %p243 = scmp.eq.s32.totalorder %s16, 1
      %p244 = scmp.ne.s32.totalorder %s239, %s241
      %p245 = scmp.eq.s32.totalorder %s16, 0
      %p246 = por %p244, %p245
      %p247 = scmp.ne.s32.totalorder %s239, %s241
      %p248 = scmp.eq.s32.totalorder %s21, 1
      %p249 = por %p247, %p248
      %p250 = scmp.ne.s32.totalorder %s241, %s242
      %p251 = scmp.eq.s32.totalorder %s21, 0
      %p252 = por %p250, %p251
      %p253 = scmp.ne.s32.totalorder %s241, %s242
      %p254 = scmp.eq.s32.totalorder %s22, 1
      %p255 = por %p253, %p254
      %p257 = scmp.ne.s32.totalorder %s242, %s256
      %p258 = scmp.eq.s32.totalorder %s22, 0
      %p259 = por %p257, %p258
      %s260 = ssub.s32 %s24, %s31
      %p261 = scmp.eq.s32.totalorder %s260, 0
      %s263 = sadd.s32 %s262, 1
      %s264 = scalar_select %p261, %s262, %s263
      %p267 = pneg %p261
      %p268 = scmp.eq.s32.totalorder %s16, 1
      %p269 = por %p267, %p268
      %p270 = scmp.ne.s32.totalorder %s262, %s265
      %p271 = scmp.eq.s32.totalorder %s16, 0
      %p272 = por %p270, %p271
      %p273 = scmp.ne.s32.totalorder %s262, %s265
      %p274 = scmp.eq.s32.totalorder %s21, 1
      %p275 = por %p273, %p274
      %p276 = scmp.ne.s32.totalorder %s265, %s266
      %p277 = scmp.eq.s32.totalorder %s21, 0
      %p278 = por %p276, %p277
      %p279 = scmp.ne.s32.totalorder %s265, %s266
      %p280 = scmp.eq.s32.totalorder %s22, 1
      %p281 = por %p279, %p280
      %p283 = scmp.ne.s32.totalorder %s266, %s282
      %p284 = scmp.eq.s32.totalorder %s22, 0
      %p285 = por %p283, %p284
      %p286 = scmp.le.s32.totalorder 1, %s16
      %p287 = scmp.lt.s32.totalorder %s16, 3
      %p288 = pnand %p286, %p287
      %p289 = pneg %p288
      // Predicated region
      $region9: #{tpu_custom_call.1} parent=5 // pred_check
        _
      $region10: #{tpu_custom_call.1} parent=5 // pred_check_branch
        %291 = sbr.rel (%p288) target = $region12
      $region11: #{tpu_custom_call.1} parent=5 // pred_region
        %s292 = ssub.s32 %s16, 1
        // Predicated region
        $region13: #{tpu_custom_call.1} parent=11 // pred_check
          %p293 = pneg %p54
        $region14: #{tpu_custom_call.1} parent=11 // pred_check_branch
          %295 = sbr.rel (%p293) target = $region16
        $region15: #{tpu_custom_call.1} parent=11 // pred_region
          %p296 = scmp.lt.s32.totalorder %s26, 0
          %s297 = scalar_select %p296, %s26, 0
          %s298 = smul.addr %s297, 8
          %s299 = scalar_lea.vmem %s0, %s298
        $region16: #{tpu_custom_call.1} parent=11 // pred_fallthru
          _
        // Predicated region
        $region17: #{tpu_custom_call.1} parent=11 // pred_check
          %p300 = pneg %p80
        $region18: #{tpu_custom_call.1} parent=11 // pred_check_branch
          %302 = sbr.rel (%p300) target = $region20
        $region19: #{tpu_custom_call.1} parent=11 // pred_region
          %p303 = scmp.lt.s32.totalorder %s26, 0
          %s304 = scalar_select %p303, %s26, 0
          %s305 = smul.addr %s304, 8
          %s306 = scalar_lea.vmem %s1, %s305
        $region20: #{tpu_custom_call.1} parent=11 // pred_fallthru
          _
        // Predicated region
        $region21: #{tpu_custom_call.1} parent=11 // pred_check
          %p307 = pneg %p231
        $region22: #{tpu_custom_call.1} parent=11 // pred_check_branch
          %309 = sbr.rel (%p307) target = $region24
        $region23: #{tpu_custom_call.1} parent=11 // pred_region
          _
        $region24: #{tpu_custom_call.1} parent=11 // pred_fallthru
          _
        // Predicated region
        $region25: #{tpu_custom_call.1} parent=11 // pred_check
          %p310 = pneg %p252
        $region26: #{tpu_custom_call.1} parent=11 // pred_check_branch
          %312 = sbr.rel (%p310) target = $region28
        $region27: #{tpu_custom_call.1} parent=11 // pred_region
          _
        $region28: #{tpu_custom_call.1} parent=11 // pred_fallthru
          _
      $region12: #{tpu_custom_call.1} parent=5 // pred_fallthru
        _
      %p313 = scmp.lt.s32.totalorder %s16, 2
      // Predicated region
      $region29: #{tpu_custom_call.1} parent=5 // pred_check
        %p314 = pneg %p313
      $region30: #{tpu_custom_call.1} parent=5 // pred_check_branch
        %316 = sbr.rel (%p314) target = $region32
      $region31: #{tpu_custom_call.1} parent=5 // pred_region
        // Predicated region
        $region33: #{tpu_custom_call.1} parent=31 // pred_check
          %p317 = pneg %p100
        $region34: #{tpu_custom_call.1} parent=31 // pred_check_branch
          %319 = sbr.rel (%p317) target = $region36
        $region35: #{tpu_custom_call.1} parent=31 // pred_region
          %p320 = scmp.lt.s32.totalorder %s23, 1
          %s321 = scalar_select %p320, %s23, 1
          %s322 = smul.addr %s321, 12
          %s323 = smul.addr %s322, 4
          %s324 = scalar_lea.vmem %s2, %s323
        $region36: #{tpu_custom_call.1} parent=31 // pred_fallthru
          _
        // Predicated region
        $region37: #{tpu_custom_call.1} parent=31 // pred_check
          %p325 = pneg %p126
        $region38: #{tpu_custom_call.1} parent=31 // pred_check_branch
          %327 = sbr.rel (%p325) target = $region40
        $region39: #{tpu_custom_call.1} parent=31 // pred_region
          %p328 = scmp.lt.s32.totalorder %s23, 1
          %s329 = scalar_select %p328, %s23, 1
          %s330 = smul.addr %s329, 6
          %s331 = smul.addr %s330, 4
          %s332 = scalar_lea.vmem %s3, %s331
        $region40: #{tpu_custom_call.1} parent=31 // pred_fallthru
          _
        // Predicated region
        $region41: #{tpu_custom_call.1} parent=31 // pred_check
          %p333 = pneg %p152
        $region42: #{tpu_custom_call.1} parent=31 // pred_check_branch
          %335 = sbr.rel (%p333) target = $region44
        $region43: #{tpu_custom_call.1} parent=31 // pred_region
          %p336 = scmp.lt.s32.totalorder %s23, 1
          %s337 = scalar_select %p336, %s23, 1
          %s338 = smul.addr %s337, 12
          %s339 = smul.addr %s338, 4
          %s340 = scalar_lea.vmem %s4, %s339
        $region44: #{tpu_custom_call.1} parent=31 // pred_fallthru
          _
        // Predicated region
        $region45: #{tpu_custom_call.1} parent=31 // pred_check
          %p341 = pneg %p178
        $region46: #{tpu_custom_call.1} parent=31 // pred_check_branch
          %343 = sbr.rel (%p341) target = $region48
        $region47: #{tpu_custom_call.1} parent=31 // pred_region
          %p344 = scmp.lt.s32.totalorder %s23, 1
          %s345 = scalar_select %p344, %s23, 1
          %s346 = smul.addr %s345, 24
          %s347 = smul.addr %s346, 4
          %s348 = scalar_lea.vmem %s5, %s347
        $region48: #{tpu_custom_call.1} parent=31 // pred_fallthru
          _
        // Predicated region
        $region49: #{tpu_custom_call.1} parent=31 // pred_check
          %p349 = pneg %p204
        $region50: #{tpu_custom_call.1} parent=31 // pred_check_branch
          %351 = sbr.rel (%p349) target = $region52
        $region51: #{tpu_custom_call.1} parent=31 // pred_region
          %p352 = scmp.lt.s32.totalorder %s23, 1
          %s353 = scalar_select %p352, %s23, 1
          %s354 = smul.addr %s353, 2
          %s355 = smul.addr %s354, 8
          %s356 = scalar_lea.vmem %s6, %s355
        $region52: #{tpu_custom_call.1} parent=31 // pred_fallthru
          _
      $region32: #{tpu_custom_call.1} parent=5 // pred_fallthru
        _
      %p357 = scmp.le.s32.totalorder 1, %s16
      %p358 = scmp.lt.s32.totalorder %s16, 3
      %p359 = pnand %p357, %p358
      %p360 = pneg %p359
      // Predicated region
      $region53: #{tpu_custom_call.1} parent=5 // pred_check
        _
      $region54: #{tpu_custom_call.1} parent=5 // pred_check_branch
        %362 = sbr.rel (%p359) target = $region56
      $region55: #{tpu_custom_call.1} parent=5 // pred_region
        %s363 = ssub.s32 %s16, 1
        %p364 = scmp.lt.s32.totalorder %s26, 0
        %s365 = scalar_select %p364, %s26, 0
        %s366 = smul.addr %s365, 8
        %s367 = scalar_lea.vmem %s0, %s366
        %p368 = pneg %p54
        %p369 = pneg %p51
        %p370 = scmp.lt.s32.totalorder %s26, 0
        %s371 = scalar_select %p370, %s26, 0
        %s372 = smul.addr %s371, 8
        %s373 = scalar_lea.vmem %s1, %s372
        %p374 = pneg %p80
        %p375 = pneg %p77
        %p376 = scmp.lt.s32.totalorder %s25, 1
        %s377 = scalar_select %p376, %s25, 1
        %s378 = smul.addr %s377, 12
        %s379 = smul.addr %s378, 4
        %s380 = scalar_lea.vmem %s2, %s379
        %p381 = pneg %p106
        %p382 = pneg %p103
        %p383 = scmp.lt.s32.totalorder %s25, 1
        %s384 = scalar_select %p383, %s25, 1
        %s385 = smul.addr %s384, 6
        %s386 = smul.addr %s385, 4
        %s387 = scalar_lea.vmem %s3, %s386
        %p388 = pneg %p132
        %p389 = pneg %p129
        %p390 = scmp.lt.s32.totalorder %s25, 1
        %s391 = scalar_select %p390, %s25, 1
        %s392 = smul.addr %s391, 12
        %s393 = smul.addr %s392, 4
        %s394 = scalar_lea.vmem %s4, %s393
        %p395 = pneg %p158
        %p396 = pneg %p155
        %p397 = scmp.lt.s32.totalorder %s25, 1
        %s398 = scalar_select %p397, %s25, 1
        %s399 = smul.addr %s398, 24
        %s400 = smul.addr %s399, 4
        %s401 = scalar_lea.vmem %s5, %s400
        %p402 = pneg %p184
        %p403 = pneg %p181
        %p404 = scmp.lt.s32.totalorder %s25, 1
        %s405 = scalar_select %p404, %s25, 1
        %s406 = smul.addr %s405, 2
        %s407 = smul.addr %s406, 8
        %s408 = scalar_lea.vmem %s6, %s407
        %p409 = pneg %p210
        %p410 = pneg %p207
        %p411 = pneg %p231
        %p412 = pneg %p228
        %p413 = pneg %p252
        %p414 = pneg %p249
        %p415 = pneg %p278
        %p416 = pneg %p275
        %p417 = scmp.lt.s32.totalorder %s26, 0
        %s418 = scalar_select %p417, %s26, 0
        %s419 = smul.addr %s418, 8
        %s420 = scalar_lea.vmem %s0, %s419
        %p421 = scmp.lt.s32.totalorder %s26, 0
        %s422 = scalar_select %p421, %s26, 0
        %s423 = smul.addr %s422, 8
        %s424 = scalar_lea.vmem %s1, %s423
        %p425 = scmp.lt.s32.totalorder %s25, 1
        %s426 = scalar_select %p425, %s25, 1
        %s427 = smul.addr %s426, 12
        %s428 = smul.addr %s427, 4
        %s429 = scalar_lea.vmem %s2, %s428
        %p430 = scmp.lt.s32.totalorder %s25, 1
        %s431 = scalar_select %p430, %s25, 1
        %s432 = smul.addr %s431, 6
        %s433 = smul.addr %s432, 4
        %s434 = scalar_lea.vmem %s3, %s433
        %p435 = scmp.lt.s32.totalorder %s25, 1
        %s436 = scalar_select %p435, %s25, 1
        %s437 = smul.addr %s436, 12
        %s438 = smul.addr %s437, 4
        %s439 = scalar_lea.vmem %s4, %s438
        %p440 = scmp.lt.s32.totalorder %s25, 1
        %s441 = scalar_select %p440, %s25, 1
        %s442 = smul.addr %s441, 24
        %s443 = smul.addr %s442, 4
        %s444 = scalar_lea.vmem %s5, %s443
        %p445 = scmp.lt.s32.totalorder %s25, 1
        %s446 = scalar_select %p445, %s25, 1
        %s447 = smul.addr %s446, 2
        %s448 = smul.addr %s447, 8
        %s449 = scalar_lea.vmem %s6, %s448
        %p451 = scmp.eq.s32.totalorder %s25, 0
        // Predicated region
        $region57: #{tpu_custom_call.1} parent=55 // pred_check
          %p452 = pneg %p451
        $region58: #{tpu_custom_call.1} parent=55 // pred_check_branch
          %454 = sbr.rel (%p452) target = $region60
        $region59: #{tpu_custom_call.1} parent=55 // pred_region
          %v455 = vld [vmem:[%s420] sm:$0xff]
          %v456 = vld [vmem:[%s424] sm:$0xff]
          %v457 = vadd.f32 %v455, %v456
          %s458 = smul.u32 %s26, 8
          %s459 = scalar_lea.vmem [#allocation2], %s458
          %vm460 = vcmask 392192
          %461 = vst.msk [vmem:[%s459] sm:$0xff] %vm460, %v457
        $region60: #{tpu_custom_call.1} parent=55 // pred_fallthru
          _
        %s462 = smul.u32 %s26, 8
        %s463 = scalar_lea.vmem [#allocation2], %s462
        %v464 = vld [vmem:[%s463] sm:$0xff]
        %v465 = vld [vmem:[%s449] ss:$0 sm:$0xff]
        %v466 = vld [vmem:[%s449 + $0x1] ss:$0 sm:$0xff]
        %s467 = scalar_lea.vmem %s449, 2
        %v468 = vld [vmem:[%s467] ss:$8 sm:$0x3]
        %v469 = vld [vmem:[%s449 + $0x3] ss:$0 sm:$0xff]
        %v470 = vld [vmem:[%s449 + $0x4] ss:$0 sm:$0xff]
        %v471 = vld [vmem:[%s449 + $0x5] ss:$0 sm:$0xff]
        %s472 = scalar_lea.vmem %s449, 6
        %v473 = vld [vmem:[%s472] ss:$8 sm:$0x3]
        %v474 = vld [vmem:[%s449 + $0x7] ss:$0 sm:$0xff]
        %vm475 = vcmask 392192
        %v476 = vsel %vm475, %v464, 0.0
        %477 = vadd.xlane.f32.xlu0 %v476
        %v478 = vpop.xlane.xlu0 %477
        %v479 = vrcp.pop 48.0
        %v480 = vmul.f32 %v478, %v479
        %v481 = vsub.f32 %v464, %v480
        %v482 = vmul.f32 %v481, %v481
        %v483 = vsel %vm475, %v482, 0.0
        %484 = vadd.xlane.f32.xlu0 %v483
        %v485 = vpop.xlane.xlu0 %484
        %v486 = vmul.f32 %v485, %v479
        %v487 = vadd.f32 %v486, 1e-05
        %v488 = vrsqrt.pop %v487
        %v489 = vmul.f32 %v481, %v488
        %v490 = vmul.f32 %v489, %v465
        %v491 = vadd.f32 %v490, %v466
        %v492 = vpack.c.bf16 %v491, %v491
        %v493 = vld [vmem:[%s429] sm:$0xff]
        %v494 = vld [vmem:[%s429 + $0x8] sm:$0xff]
        %v495 = vld [vmem:[%s429 + $0x10] sm:$0xff]
        %v496 = vld [vmem:[%s429 + $0x18] sm:$0xff]
        %v497 = vld [vmem:[%s429 + $0x20] sm:$0xff]
        %v498 = vld [vmem:[%s429 + $0x28] sm:$0xff]
        %v500 = vlaneseq
        %v501 = vshrl.u32 %v500, 7
        %v502 = vsub.s32 0, %v501
        %v503 = vrot.slane %v468, %v502
        %v504 = vlaneseq
        %v505 = vshrl.u32 %v504, 7
        %v506 = vsub.s32 1, %v505
        %v507 = vrot.slane %v468, %v506
        %v516 = vunpack.c.l.b16 %v493
        %v517 = vunpack.c.h.b16 %v493
        %v518 = vunpack.c.l.b16 %v494
        %v519 = vunpack.c.h.b16 %v494
        %v520 = vunpack.c.l.b16 %v495
        %v521 = vunpack.c.h.b16 %v495
        %v522 = vunpack.c.l.b16 %v496
        %v523 = vunpack.c.h.b16 %v496
        %v524 = vunpack.c.l.b16 %v497
        %v525 = vunpack.c.h.b16 %v497
        %v526 = vunpack.c.l.b16 %v498
        %v527 = vunpack.c.h.b16 %v498
        %v528 = vpack.c.b16 %v518, %v516
        %v529 = vpack.c.b16 %v519, %v517
        %v530 = vpack.c.b16 %v522, %v520
        %v531 = vpack.c.b16 %v523, %v521
        %v532 = vpack.c.b16 %v526, %v524
        %v533 = vpack.c.b16 %v527, %v525
        %v541 = vsel %vm475, %v492, 0
        %543 = vmatprep.subr.bf16.mxu0 %v529
        %544 = vmatpush1.bf16.msra.mxu0 %v528
        %545 = vmatprep.subr.bf16.mxu0 %v531
        %546 = vmatpush1.bf16.msra.mxu0 %v530
        %547 = vmatprep.subr.bf16.mxu0 %v533
        %548 = vmatpush1.bf16.msra.mxu0 %v532
        %549 = vmatprep.subr.bf16.mxu0 0
        %550 = vmatpush1.bf16.msra.mxu0 0
        %551 = vmatprep.subr.bf16.mxu0 0
        %552 = vmatpush1.bf16.msra.mxu0 0
        %553 = vmatprep.subr.bf16.mxu0 0
        %554 = vmatpush1.bf16.msra.mxu0 0
        %555 = vmatprep.subr.bf16.mxu0 0
        %556 = vmatpush1.bf16.msra.mxu0 0
        %557 = vmatprep.subr.bf16.mxu0 0
        %558 = vmatpush1.bf16.msra.mxu0 0
        %559 = vmatprep.subr.bf16.mxu0 0
        %560 = vmatpush1.bf16.msra.mxu0 0
        %561 = vmatprep.subr.bf16.mxu0 0
        %562 = vmatpush1.bf16.msra.mxu0 0
        %563 = vmatprep.subr.bf16.mxu0 0
        %564 = vmatpush1.bf16.msra.mxu0 0
        %565 = vmatprep.subr.bf16.mxu0 0
        %566 = vmatpush1.bf16.msra.mxu0 0
        %567 = vmatprep.subr.bf16.mxu0 0
        %568 = vmatpush1.bf16.msra.mxu0 0
        %569 = vmatprep.subr.bf16.mxu0 0
        %570 = vmatpush1.bf16.msra.mxu0 0
        %571 = vmatprep.subr.bf16.mxu0 0
        %572 = vmatpush1.bf16.msra.mxu0 0
        %573 = vmatprep.subr.bf16.mxu0 0
        %574 = vmatpush1.bf16.msra.mxu0 0
        %575 = vmatprep.mubr.bf16.mxu0 0
        %576 = vmatmul.mubr.bf16.gmra.mrb[0].mxu0 %v541
        %v577 = vpop.f32.mrb[0].mxu0
        %v578 = vadd.f32 %v503, %v577
        %v579 = vpop.f32.mrb[0].mxu0
        %v580 = vadd.f32 %v507, %v579
        %v581 = vpop.f32.mrb[0].mxu0
        %v582 = vpop.f32.mrb[0].mxu0
        %583 = vdwg.mxu0
        %v584 = vpack.c.bf16 %v578, %v578
        %586 = vrot.lane.b32.xlu0 %v584, 80
        %v587 = vpop.permute.xlu0 %586
        %vm588 = vcmask 97280
        %v590 = vsel %vm588, %v584, 0
        %v593 = vsel %vm588, %v587, 0
        %595 = vmatprep.subr.bf16.mxu0 0
        %596 = vmatpush1.bf16.xpose.msra.mxu0 %v593
        %597 = vmatprep.subr.bf16.mxu0 0
        %598 = vmatpush1.bf16.xpose.msra.mxu0 0
        %599 = vmatprep.subr.bf16.mxu0 0
        %600 = vmatpush1.bf16.xpose.msra.mxu0 0
        %601 = vmatprep.subr.bf16.mxu0 0
        %602 = vmatpush1.bf16.xpose.msra.mxu0 0
        %603 = vmatprep.subr.bf16.mxu0 0
        %604 = vmatpush1.bf16.xpose.msra.mxu0 0
        %605 = vmatprep.subr.bf16.mxu0 0
        %606 = vmatpush1.bf16.xpose.msra.mxu0 0
        %607 = vmatprep.subr.bf16.mxu0 0
        %608 = vmatpush1.bf16.xpose.msra.mxu0 0
        %609 = vmatprep.subr.bf16.mxu0 0
        %610 = vmatpush1.bf16.xpose.msra.mxu0 0
        %611 = vmatprep.subr.bf16.mxu0 0
        %612 = vmatpush1.bf16.xpose.msra.mxu0 0
        %613 = vmatprep.subr.bf16.mxu0 0
        %614 = vmatpush1.bf16.xpose.msra.mxu0 0
        %615 = vmatprep.subr.bf16.mxu0 0
        %616 = vmatpush1.bf16.xpose.msra.mxu0 0
        %617 = vmatprep.subr.bf16.mxu0 0
        %618 = vmatpush1.bf16.xpose.msra.mxu0 0
        %619 = vmatprep.subr.bf16.mxu0 0
        %620 = vmatpush1.bf16.xpose.msra.mxu0 0
        %621 = vmatprep.subr.bf16.mxu0 0
        %622 = vmatpush1.bf16.xpose.msra.mxu0 0
        %623 = vmatprep.subr.bf16.mxu0 0
        %624 = vmatpush1.bf16.xpose.msra.mxu0 0
        %625 = vmatprep.subr.bf16.mxu0 0
        %626 = vmatpush1.bf16.xpose.msra.mxu0 0
        %627 = vmatprep.mubr.bf16.mxu0 0
        %628 = vmatmul.mubr.bf16.gmra.mrb[0].mxu0 %v590
        %v629 = vpop.f32.mrb[0].mxu0
        %v630 = vadd.f32 0.0, %v629
        %v631 = vpop.f32.mrb[0].mxu0
        %v632 = vpop.f32.mrb[0].mxu0
        %v633 = vpop.f32.mrb[0].mxu0
        %634 = vdwg.mxu0
        %v635 = vmul.f32 %v630, 0.28867513
        %v636 = vlaneseq
        %v637 = vand.u32 %v636, 127
        %vm638 = vcmp.lt.s32.totalorder %v637, 4
        %v639 = vsel %vm638, %v635, -1e+30
        %vm640 = vcmask 64512
        %v641 = vsel %vm640, %v639, -inf
        %642 = vmax.xlane.f32.xlu0 %v641
        %v643 = vpop.xlane.xlu0 %642
        %v644 = vsub.f32 %v639, %v643
        %v645 = vmul.f32 %v644, 1.442695
        %v646 = vpow.pop %v645
        %v647 = vsel %vm640, %v646, 0.0
        %648 = vadd.xlane.f32.xlu0 %v647
        %v649 = vpop.xlane.xlu0 %648
        %v650 = vrcp.pop %v649
        %v651 = vmul.f32 %v646, %v650
        %v652 = vpack.c.bf16 %v651, %v651
        %653 = vrot.lane.b32.xlu0 %v584, 32
        %v654 = vpop.permute.xlu0 %653
        %v656 = vsel %vm640, %v652, 0
        %vm658 = vcmask 1043456
        %v660 = vsel %vm658, %v654, 0
        %662 = vmatprep.subr.bf16.mxu0 0
        %663 = vmatpush1.bf16.msra.mxu0 %v660
        %664 = vmatprep.subr.bf16.mxu0 0
        %665 = vmatpush1.bf16.msra.mxu0 0
        %666 = vmatprep.subr.bf16.mxu0 0
        %667 = vmatpush1.bf16.msra.mxu0 0
        %668 = vmatprep.subr.bf16.mxu0 0
        %669 = vmatpush1.bf16.msra.mxu0 0
        %670 = vmatprep.subr.bf16.mxu0 0
        %671 = vmatpush1.bf16.msra.mxu0 0
        %672 = vmatprep.subr.bf16.mxu0 0
        %673 = vmatpush1.bf16.msra.mxu0 0
        %674 = vmatprep.subr.bf16.mxu0 0
        %675 = vmatpush1.bf16.msra.mxu0 0
        %676 = vmatprep.subr.bf16.mxu0 0
        %677 = vmatpush1.bf16.msra.mxu0 0
        %678 = vmatprep.subr.bf16.mxu0 0
        %679 = vmatpush1.bf16.msra.mxu0 0
        %680 = vmatprep.subr.bf16.mxu0 0
        %681 = vmatpush1.bf16.msra.mxu0 0
        %682 = vmatprep.subr.bf16.mxu0 0
        %683 = vmatpush1.bf16.msra.mxu0 0
        %684 = vmatprep.subr.bf16.mxu0 0
        %685 = vmatpush1.bf16.msra.mxu0 0
        %686 = vmatprep.subr.bf16.mxu0 0
        %687 = vmatpush1.bf16.msra.mxu0 0
        %688 = vmatprep.subr.bf16.mxu0 0
        %689 = vmatpush1.bf16.msra.mxu0 0
        %690 = vmatprep.subr.bf16.mxu0 0
        %691 = vmatpush1.bf16.msra.mxu0 0
        %692 = vmatprep.subr.bf16.mxu0 0
        %693 = vmatpush1.bf16.msra.mxu0 0
        %694 = vmatprep.mubr.bf16.mxu0 0
        %695 = vmatmul.mubr.bf16.gmra.mrb[0].mxu0 %v656
        %v696 = vpop.f32.mrb[0].mxu0
        %v697 = vadd.f32 0.0, %v696
        %v698 = vpop.f32.mrb[0].mxu0
        %v699 = vpop.f32.mrb[0].mxu0
        %v700 = vpop.f32.mrb[0].mxu0
        %701 = vdwg.mxu0
        %702 = vst.msk [vmem:[#allocation3] sm:$0xff] %vm588, %v697
        %703 = vrot.lane.b32.xlu0 %v584, 116
        %v704 = vpop.permute.xlu0 %703
        %705 = vrot.lane.b32.xlu0 %v584, 68
        %v706 = vpop.permute.xlu0 %705
        %v708 = vsel %vm588, %v704, 0
        %v711 = vsel %vm588, %v706, 0
        %713 = vmatprep.subr.bf16.mxu0 0
        %714 = vmatpush1.bf16.xpose.msra.mxu0 %v711
        %715 = vmatprep.subr.bf16.mxu0 0
        %716 = vmatpush1.bf16.xpose.msra.mxu0 0
        %717 = vmatprep.subr.bf16.mxu0 0
        %718 = vmatpush1.bf16.xpose.msra.mxu0 0
        %719 = vmatprep.subr.bf16.mxu0 0
        %720 = vmatpush1.bf16.xpose.msra.mxu0 0
        %721 = vmatprep.subr.bf16.mxu0 0
        %722 = vmatpush1.bf16.xpose.msra.mxu0 0
        %723 = vmatprep.subr.bf16.mxu0 0
        %724 = vmatpush1.bf16.xpose.msra.mxu0 0
        %725 = vmatprep.subr.bf16.mxu0 0
        %726 = vmatpush1.bf16.xpose.msra.mxu0 0
        %727 = vmatprep.subr.bf16.mxu0 0
        %728 = vmatpush1.bf16.xpose.msra.mxu0 0
        %729 = vmatprep.subr.bf16.mxu0 0
        %730 = vmatpush1.bf16.xpose.msra.mxu0 0
        %731 = vmatprep.subr.bf16.mxu0 0
        %732 = vmatpush1.bf16.xpose.msra.mxu0 0
        %733 = vmatprep.subr.bf16.mxu0 0
        %734 = vmatpush1.bf16.xpose.msra.mxu0 0
        %735 = vmatprep.subr.bf16.mxu0 0
        %736 = vmatpush1.bf16.xpose.msra.mxu0 0
        %737 = vmatprep.subr.bf16.mxu0 0
        %738 = vmatpush1.bf16.xpose.msra.mxu0 0
        %739 = vmatprep.subr.bf16.mxu0 0
        %740 = vmatpush1.bf16.xpose.msra.mxu0 0
        %741 = vmatprep.subr.bf16.mxu0 0
        %742 = vmatpush1.bf16.xpose.msra.mxu0 0
        %743 = vmatprep.subr.bf16.mxu0 0
        %744 = vmatpush1.bf16.xpose.msra.mxu0 0
        %745 = vmatprep.mubr.bf16.mxu0 0
        %746 = vmatmul.mubr.bf16.gmra.mrb[0].mxu0 %v708
        %v747 = vpop.f32.mrb[0].mxu0
        %v748 = vadd.f32 0.0, %v747
        %v749 = vpop.f32.mrb[0].mxu0
        %v750 = vpop.f32.mrb[0].mxu0
        %v751 = vpop.f32.mrb[0].mxu0
        %752 = vdwg.mxu0
        %v753 = vmul.f32 %v748, 0.28867513
        %v754 = vsel %vm638, %v753, -1e+30
        %v755 = vsel %vm640, %v754, -inf
        %756 = vmax.xlane.f32.xlu0 %v755
        %v757 = vpop.xlane.xlu0 %756
        %v758 = vsub.f32 %v754, %v757
        %v759 = vmul.f32 %v758, 1.442695
        %v760 = vpow.pop %v759
        %v761 = vsel %vm640, %v760, 0.0
        %762 = vadd.xlane.f32.xlu0 %v761
        %v763 = vpop.xlane.xlu0 %762
        %v764 = vrcp.pop %v763
        %v765 = vmul.f32 %v760, %v764
        %v766 = vpack.c.bf16 %v765, %v765
        %767 = vrot.lane.b32.xlu0 %v584, 20
        %v768 = vpop.permute.xlu0 %767
        %v770 = vsel %vm640, %v766, 0
        %v773 = vsel %vm658, %v768, 0
        %775 = vmatprep.subr.bf16.mxu0 0
        %776 = vmatpush1.bf16.msra.mxu0 %v773
        %777 = vmatprep.subr.bf16.mxu0 0
        %778 = vmatpush1.bf16.msra.mxu0 0
        %779 = vmatprep.subr.bf16.mxu0 0
        %780 = vmatpush1.bf16.msra.mxu0 0
        %781 = vmatprep.subr.bf16.mxu0 0
        %782 = vmatpush1.bf16.msra.mxu0 0
        %783 = vmatprep.subr.bf16.mxu0 0
        %784 = vmatpush1.bf16.msra.mxu0 0
        %785 = vmatprep.subr.bf16.mxu0 0
        %786 = vmatpush1.bf16.msra.mxu0 0
        %787 = vmatprep.subr.bf16.mxu0 0
        %788 = vmatpush1.bf16.msra.mxu0 0
        %789 = vmatprep.subr.bf16.mxu0 0
        %790 = vmatpush1.bf16.msra.mxu0 0
        %791 = vmatprep.subr.bf16.mxu0 0
        %792 = vmatpush1.bf16.msra.mxu0 0
        %793 = vmatprep.subr.bf16.mxu0 0
        %794 = vmatpush1.bf16.msra.mxu0 0
        %795 = vmatprep.subr.bf16.mxu0 0
        %796 = vmatpush1.bf16.msra.mxu0 0
        %797 = vmatprep.subr.bf16.mxu0 0
        %798 = vmatpush1.bf16.msra.mxu0 0
        %799 = vmatprep.subr.bf16.mxu0 0
        %800 = vmatpush1.bf16.msra.mxu0 0
        %801 = vmatprep.subr.bf16.mxu0 0
        %802 = vmatpush1.bf16.msra.mxu0 0
        %803 = vmatprep.subr.bf16.mxu0 0
        %804 = vmatpush1.bf16.msra.mxu0 0
        %805 = vmatprep.subr.bf16.mxu0 0
        %806 = vmatpush1.bf16.msra.mxu0 0
        %807 = vmatprep.mubr.bf16.mxu0 0
        %808 = vmatmul.mubr.bf16.gmra.mrb[0].mxu0 %v770
        %v809 = vpop.f32.mrb[0].mxu0
        %v810 = vadd.f32 0.0, %v809
        %v811 = vpop.f32.mrb[0].mxu0
        %v812 = vpop.f32.mrb[0].mxu0
        %v813 = vpop.f32.mrb[0].mxu0
        %814 = vdwg.mxu0
        %816 = vrot.lane.b32.xlu0 %v810, 12
        %v817 = vpop.permute.xlu0 %816
        %vm819 = vcmask 195680
        %820 = vst.msk [vmem:[#allocation3] sm:$0xff] %vm819, %v817
        %v821 = vpack.c.bf16 %v580, %v580
        %822 = vrot.lane.b32.xlu0 %v584, 104
        %v823 = vpop.permute.xlu0 %822
        %824 = vrot.lane.b32.xlu0 %v584, 56
        %v825 = vpop.permute.xlu0 %824
        %v827 = vsel %vm588, %v823, 0
        %v830 = vsel %vm588, %v825, 0
        %832 = vmatprep.subr.bf16.mxu0 0
        %833 = vmatpush1.bf16.xpose.msra.mxu0 %v830
        %834 = vmatprep.subr.bf16.mxu0 0
        %835 = vmatpush1.bf16.xpose.msra.mxu0 0
        %836 = vmatprep.subr.bf16.mxu0 0
        %837 = vmatpush1.bf16.xpose.msra.mxu0 0
        %838 = vmatprep.subr.bf16.mxu0 0
        %839 = vmatpush1.bf16.xpose.msra.mxu0 0
        %840 = vmatprep.subr.bf16.mxu0 0
        %841 = vmatpush1.bf16.xpose.msra.mxu0 0
        %842 = vmatprep.subr.bf16.mxu0 0
        %843 = vmatpush1.bf16.xpose.msra.mxu0 0
        %844 = vmatprep.subr.bf16.mxu0 0
        %845 = vmatpush1.bf16.xpose.msra.mxu0 0
        %846 = vmatprep.subr.bf16.mxu0 0
        %847 = vmatpush1.bf16.xpose.msra.mxu0 0
        %848 = vmatprep.subr.bf16.mxu0 0
        %849 = vmatpush1.bf16.xpose.msra.mxu0 0
        %850 = vmatprep.subr.bf16.mxu0 0
        %851 = vmatpush1.bf16.xpose.msra.mxu0 0
        %852 = vmatprep.subr.bf16.mxu0 0
        %853 = vmatpush1.bf16.xpose.msra.mxu0 0
        %854 = vmatprep.subr.bf16.mxu0 0
        %855 = vmatpush1.bf16.xpose.msra.mxu0 0
        %856 = vmatprep.subr.bf16.mxu0 0
        %857 = vmatpush1.bf16.xpose.msra.mxu0 0
        %858 = vmatprep.subr.bf16.mxu0 0
        %859 = vmatpush1.bf16.xpose.msra.mxu0 0
        %860 = vmatprep.subr.bf16.mxu0 0
        %861 = vmatpush1.bf16.xpose.msra.mxu0 0
        %862 = vmatprep.subr.bf16.mxu0 0
        %863 = vmatpush1.bf16.xpose.msra.mxu0 0
        %864 = vmatprep.mubr.bf16.mxu0 0
        %865 = vmatmul.mubr.bf16.gmra.mrb[0].mxu0 %v827
        %v866 = vpop.f32.mrb[0].mxu0
        %v867 = vadd.f32 0.0, %v866
        %v868 = vpop.f32.mrb[0].mxu0
        %v869 = vpop.f32.mrb[0].mxu0
        %v870 = vpop.f32.mrb[0].mxu0
        %871 = vdwg.mxu0
        %v872 = vmul.f32 %v867, 0.28867513
        %v873 = vsel %vm638, %v872, -1e+30
        %v874 = vsel %vm640, %v873, -inf
        %875 = vmax.xlane.f32.xlu0 %v874
        %v876 = vpop.xlane.xlu0 %875
        %v877 = vsub.f32 %v873, %v876
        %v878 = vmul.f32 %v877, 1.442695
        %v879 = vpow.pop %v878
        %v880 = vsel %vm640, %v879, 0.0
        %881 = vadd.xlane.f32.xlu0 %v880
        %v882 = vpop.xlane.xlu0 %881
        %v883 = vrcp.pop %v882
        %v884 = vmul.f32 %v879, %v883
        %v885 = vpack.c.bf16 %v884, %v884
        %887 = vrot.lane.b32.xlu0 %v584, 8
        %v888 = vpop.permute.xlu0 %887
        %889 = vrot.lane.b32.xlu0 %v821, 8
        %v890 = vpop.permute.xlu0 %889
        %vm891 = vcmask 64512
        %v892 = vsel %vm891, %v888, %v890
        %v894 = vsel %vm640, %v885, 0
        %v897 = vsel %vm658, %v892, 0
        %899 = vmatprep.subr.bf16.mxu0 0
        %900 = vmatpush1.bf16.msra.mxu0 %v897
        %901 = vmatprep.subr.bf16.mxu0 0
        %902 = vmatpush1.bf16.msra.mxu0 0
        %903 = vmatprep.subr.bf16.mxu0 0
        %904 = vmatpush1.bf16.msra.mxu0 0
        %905 = vmatprep.subr.bf16.mxu0 0
        %906 = vmatpush1.bf16.msra.mxu0 0
        %907 = vmatprep.subr.bf16.mxu0 0
        %908 = vmatpush1.bf16.msra.mxu0 0
        %909 = vmatprep.subr.bf16.mxu0 0
        %910 = vmatpush1.bf16.msra.mxu0 0
        %911 = vmatprep.subr.bf16.mxu0 0
        %912 = vmatpush1.bf16.msra.mxu0 0
        %913 = vmatprep.subr.bf16.mxu0 0
        %914 = vmatpush1.bf16.msra.mxu0 0
        %915 = vmatprep.subr.bf16.mxu0 0
        %916 = vmatpush1.bf16.msra.mxu0 0
        %917 = vmatprep.subr.bf16.mxu0 0
        %918 = vmatpush1.bf16.msra.mxu0 0
        %919 = vmatprep.subr.bf16.mxu0 0
        %920 = vmatpush1.bf16.msra.mxu0 0
        %921 = vmatprep.subr.bf16.mxu0 0
        %922 = vmatpush1.bf16.msra.mxu0 0
        %923 = vmatprep.subr.bf16.mxu0 0
        %924 = vmatpush1.bf16.msra.mxu0 0
        %925 = vmatprep.subr.bf16.mxu0 0
        %926 = vmatpush1.bf16.msra.mxu0 0
        %927 = vmatprep.subr.bf16.mxu0 0
        %928 = vmatpush1.bf16.msra.mxu0 0
        %929 = vmatprep.subr.bf16.mxu0 0
        %930 = vmatpush1.bf16.msra.mxu0 0
        %931 = vmatprep.mubr.bf16.mxu0 0
        %932 = vmatmul.mubr.bf16.gmra.mrb[0].mxu0 %v894
        %v933 = vpop.f32.mrb[0].mxu0
        %v934 = vadd.f32 0.0, %v933
        %v935 = vpop.f32.mrb[0].mxu0
        %v936 = vpop.f32.mrb[0].mxu0
        %v937 = vpop.f32.mrb[0].mxu0
        %938 = vdwg.mxu0
        %940 = vrot.lane.b32.xlu0 %v934, 24
        %v941 = vpop.permute.xlu0 %940
        %vm943 = vcmask 294080
        %944 = vst.msk [vmem:[#allocation3] sm:$0xff] %vm943, %v941
        %945 = vrot.lane.b32.xlu0 %v584, 92
        %v946 = vpop.permute.xlu0 %945
        %947 = vrot.lane.b32.xlu0 %v584, 44
        %v948 = vpop.permute.xlu0 %947
        %v950 = vsel %vm588, %v946, 0
        %v953 = vsel %vm588, %v948, 0
        %955 = vmatprep.subr.bf16.mxu0 0
        %956 = vmatpush1.bf16.xpose.msra.mxu0 %v953
        %957 = vmatprep.subr.bf16.mxu0 0
        %958 = vmatpush1.bf16.xpose.msra.mxu0 0
        %959 = vmatprep.subr.bf16.mxu0 0
        %960 = vmatpush1.bf16.xpose.msra.mxu0 0
        %961 = vmatprep.subr.bf16.mxu0 0
        %962 = vmatpush1.bf16.xpose.msra.mxu0 0
        %963 = vmatprep.subr.bf16.mxu0 0
        %964 = vmatpush1.bf16.xpose.msra.mxu0 0
        %965 = vmatprep.subr.bf16.mxu0 0
        %966 = vmatpush1.bf16.xpose.msra.mxu0 0
        %967 = vmatprep.subr.bf16.mxu0 0
        %968 = vmatpush1.bf16.xpose.msra.mxu0 0
        %969 = vmatprep.subr.bf16.mxu0 0
        %970 = vmatpush1.bf16.xpose.msra.mxu0 0
        %971 = vmatprep.subr.bf16.mxu0 0
        %972 = vmatpush1.bf16.xpose.msra.mxu0 0
        %973 = vmatprep.subr.bf16.mxu0 0
        %974 = vmatpush1.bf16.xpose.msra.mxu0 0
        %975 = vmatprep.subr.bf16.mxu0 0
        %976 = vmatpush1.bf16.xpose.msra.mxu0 0
        %977 = vmatprep.subr.bf16.mxu0 0
        %978 = vmatpush1.bf16.xpose.msra.mxu0 0
        %979 = vmatprep.subr.bf16.mxu0 0
        %980 = vmatpush1.bf16.xpose.msra.mxu0 0
        %981 = vmatprep.subr.bf16.mxu0 0
        %982 = vmatpush1.bf16.xpose.msra.mxu0 0
        %983 = vmatprep.subr.bf16.mxu0 0
        %984 = vmatpush1.bf16.xpose.msra.mxu0 0
        %985 = vmatprep.subr.bf16.mxu0 0
        %986 = vmatpush1.bf16.xpose.msra.mxu0 0
        %987 = vmatprep.mubr.bf16.mxu0 0
        %988 = vmatmul.mubr.bf16.gmra.mrb[0].mxu0 %v950
        %v989 = vpop.f32.mrb[0].mxu0
        %v990 = vadd.f32 0.0, %v989
        %v991 = vpop.f32.mrb[0].mxu0
        %v992 = vpop.f32.mrb[0].mxu0
        %v993 = vpop.f32.mrb[0].mxu0
        %994 = vdwg.mxu0
        %v995 = vmul.f32 %v990, 0.28867513
        %v996 = vsel %vm638, %v995, -1e+30
        %v997 = vsel %vm640, %v996, -inf
        %998 = vmax.xlane.f32.xlu0 %v997
        %v999 = vpop.xlane.xlu0 %998
        %v1000 = vsub.f32 %v996, %v999
        %v1001 = vmul.f32 %v1000, 1.442695
        %v1002 = vpow.pop %v1001
        %v1003 = vsel %vm640, %v1002, 0.0
        %1004 = vadd.xlane.f32.xlu0 %v1003
        %v1005 = vpop.xlane.xlu0 %1004
        %v1006 = vrcp.pop %v1005
        %v1007 = vmul.f32 %v1002, %v1006
        %v1008 = vpack.c.bf16 %v1007, %v1007
        %1009 = vrot.lane.b32.xlu0 %v821, 124
        %v1010 = vpop.permute.xlu0 %1009
        %v1012 = vsel %vm640, %v1008, 0
        %v1015 = vsel %vm658, %v1010, 0
        %1017 = vmatprep.subr.bf16.mxu0 0
        %1018 = vmatpush1.bf16.msra.mxu0 %v1015
        %1019 = vmatprep.subr.bf16.mxu0 0
        %1020 = vmatpush1.bf16.msra.mxu0 0
        %1021 = vmatprep.subr.bf16.mxu0 0
        %1022 = vmatpush1.bf16.msra.mxu0 0
        %1023 = vmatprep.subr.bf16.mxu0 0
        %1024 = vmatpush1.bf16.msra.mxu0 0
        %1025 = vmatprep.subr.bf16.mxu0 0
        %1026 = vmatpush1.bf16.msra.mxu0 0
        %1027 = vmatprep.subr.bf16.mxu0 0
        %1028 = vmatpush1.bf16.msra.mxu0 0
        %1029 = vmatprep.subr.bf16.mxu0 0
        %1030 = vmatpush1.bf16.msra.mxu0 0
        %1031 = vmatprep.subr.bf16.mxu0 0
        %1032 = vmatpush1.bf16.msra.mxu0 0
        %1033 = vmatprep.subr.bf16.mxu0 0
        %1034 = vmatpush1.bf16.msra.mxu0 0
        %1035 = vmatprep.subr.bf16.mxu0 0
        %1036 = vmatpush1.bf16.msra.mxu0 0
        %1037 = vmatprep.subr.bf16.mxu0 0
        %1038 = vmatpush1.bf16.msra.mxu0 0
        %1039 = vmatprep.subr.bf16.mxu0 0
        %1040 = vmatpush1.bf16.msra.mxu0 0
        %1041 = vmatprep.subr.bf16.mxu0 0
        %1042 = vmatpush1.bf16.msra.mxu0 0
        %1043 = vmatprep.subr.bf16.mxu0 0
        %1044 = vmatpush1.bf16.msra.mxu0 0
        %1045 = vmatprep.subr.bf16.mxu0 0
        %1046 = vmatpush1.bf16.msra.mxu0 0
        %1047 = vmatprep.subr.bf16.mxu0 0
        %1048 = vmatpush1.bf16.msra.mxu0 0
        %1049 = vmatprep.mubr.bf16.mxu0 0
        %1050 = vmatmul.mubr.bf16.gmra.mrb[0].mxu0 %v1012
        %v1051 = vpop.f32.mrb[0].mxu0
        %v1052 = vadd.f32 0.0, %v1051
        %v1053 = vpop.f32.mrb[0].mxu0
        %v1054 = vpop.f32.mrb[0].mxu0
        %v1055 = vpop.f32.mrb[0].mxu0
        %1056 = vdwg.mxu0
        %1058 = vrot.lane.b32.xlu0 %v1052, 36
        %v1059 = vpop.permute.xlu0 %1058
        %vm1061 = vcmask 392480
        %1062 = vst.msk [vmem:[#allocation3] sm:$0xff] %vm1061, %v1059
        %v1063 = vld [vmem:[#allocation3] sm:$0xff]
        %v1064 = vpack.c.bf16 %v1063, %v1063
        %v1065 = vld [vmem:[%s434] sm:$0xf]
        %v1066 = vld [vmem:[%s434 + $0x4] sm:$0xf]
        %v1067 = vld [vmem:[%s434 + $0x8] sm:$0xf]
        %v1068 = vld [vmem:[%s434 + $0xc] sm:$0xf]
        %v1069 = vld [vmem:[%s434 + $0x10] sm:$0xf]
        %v1070 = vld [vmem:[%s434 + $0x14] sm:$0xf]
        %v1077 = vunpack.c.l.b16 %v1065
        %v1078 = vunpack.c.l.b16 %v1066
        %v1079 = vunpack.c.l.b16 %v1067
        %v1080 = vunpack.c.l.b16 %v1068
        %v1081 = vunpack.c.l.b16 %v1069
        %v1082 = vunpack.c.l.b16 %v1070
        %v1083 = vpack.c.b16 %v1078, %v1077
        %v1084 = vpack.c.b16 %v1080, %v1079
        %v1085 = vpack.c.b16 %v1082, %v1081
        %v1090 = vsel %vm475, %v1064, 0
        %1092 = vmatprep.subr.bf16.mxu0 0
        %1093 = vmatpush1.bf16.msra.mxu0 %v1083
        %1094 = vmatprep.subr.bf16.mxu0 0
        %1095 = vmatpush1.bf16.msra.mxu0 %v1084
        %1096 = vmatprep.subr.bf16.mxu0 0
        %1097 = vmatpush1.bf16.msra.mxu0 %v1085
        %1098 = vmatprep.subr.bf16.mxu0 0
        %1099 = vmatpush1.bf16.msra.mxu0 0
        %1100 = vmatprep.subr.bf16.mxu0 0
        %1101 = vmatpush1.bf16.msra.mxu0 0
        %1102 = vmatprep.subr.bf16.mxu0 0
        %1103 = vmatpush1.bf16.msra.mxu0 0
        %1104 = vmatprep.subr.bf16.mxu0 0
        %1105 = vmatpush1.bf16.msra.mxu0 0
        %1106 = vmatprep.subr.bf16.mxu0 0
        %1107 = vmatpush1.bf16.msra.mxu0 0
        %1108 = vmatprep.subr.bf16.mxu0 0
        %1109 = vmatpush1.bf16.msra.mxu0 0
        %1110 = vmatprep.subr.bf16.mxu0 0
        %1111 = vmatpush1.bf16.msra.mxu0 0
        %1112 = vmatprep.subr.bf16.mxu0 0
        %1113 = vmatpush1.bf16.msra.mxu0 0
        %1114 = vmatprep.subr.bf16.mxu0 0
        %1115 = vmatpush1.bf16.msra.mxu0 0
        %1116 = vmatprep.subr.bf16.mxu0 0
        %1117 = vmatpush1.bf16.msra.mxu0 0
        %1118 = vmatprep.subr.bf16.mxu0 0
        %1119 = vmatpush1.bf16.msra.mxu0 0
        %1120 = vmatprep.subr.bf16.mxu0 0
        %1121 = vmatpush1.bf16.msra.mxu0 0
        %1122 = vmatprep.subr.bf16.mxu0 0
        %1123 = vmatpush1.bf16.msra.mxu0 0
        %1124 = vmatprep.mubr.bf16.mxu0 0
        %1125 = vmatmul.mubr.bf16.gmra.mrb[0].mxu0 %v1090
        %v1126 = vpop.f32.mrb[0].mxu0
        %v1127 = vadd.f32 %v469, %v1126
        %v1128 = vpop.f32.mrb[0].mxu0
        %v1129 = vpop.f32.mrb[0].mxu0
        %v1130 = vpop.f32.mrb[0].mxu0
        %1131 = vdwg.mxu0
        %v1132 = vadd.f32 %v464, %v1127
        %v1133 = vsel %vm475, %v1132, 0.0
        %1134 = vadd.xlane.f32.xlu0 %v1133
        %v1135 = vpop.xlane.xlu0 %1134
        %v1136 = vmul.f32 %v1135, %v479
        %v1137 = vsub.f32 %v1132, %v1136
        %v1138 = vmul.f32 %v1137, %v1137
        %v1139 = vsel %vm475, %v1138, 0.0
        %1140 = vadd.xlane.f32.xlu0 %v1139
        %v1141 = vpop.xlane.xlu0 %1140
        %v1142 = vmul.f32 %v1141, %v479
        %v1143 = vadd.f32 %v1142, 1e-05
        %v1144 = vrsqrt.pop %v1143
        %v1145 = vmul.f32 %v1137, %v1144
        %v1146 = vmul.f32 %v1145, %v470
        %v1147 = vadd.f32 %v1146, %v471
        %v1148 = vpack.c.bf16 %v1147, %v1147
        %v1149 = vld [vmem:[%s439] sm:$0xff]
        %v1150 = vld [vmem:[%s439 + $0x8] sm:$0xff]
        %v1151 = vld [vmem:[%s439 + $0x10] sm:$0xff]
        %v1152 = vld [vmem:[%s439 + $0x18] sm:$0xff]
        %v1153 = vld [vmem:[%s439 + $0x20] sm:$0xff]
        %v1154 = vld [vmem:[%s439 + $0x28] sm:$0xff]
        %v1156 = vlaneseq
        %v1157 = vshrl.u32 %v1156, 7
        %v1158 = vsub.s32 0, %v1157
        %v1159 = vrot.slane %v473, %v1158
        %v1160 = vlaneseq
        %v1161 = vshrl.u32 %v1160, 7
        %v1162 = vsub.s32 1, %v1161
        %v1163 = vrot.slane %v473, %v1162
        %v1172 = vunpack.c.l.b16 %v1149
        %v1173 = vunpack.c.h.b16 %v1149
        %v1174 = vunpack.c.l.b16 %v1150
        %v1175 = vunpack.c.h.b16 %v1150
        %v1176 = vunpack.c.l.b16 %v1151
        %v1177 = vunpack.c.h.b16 %v1151
        %v1178 = vunpack.c.l.b16 %v1152
        %v1179 = vunpack.c.h.b16 %v1152
        %v1180 = vunpack.c.l.b16 %v1153
        %v1181 = vunpack.c.h.b16 %v1153
        %v1182 = vunpack.c.l.b16 %v1154
        %v1183 = vunpack.c.h.b16 %v1154
        %v1184 = vpack.c.b16 %v1174, %v1172
        %v1185 = vpack.c.b16 %v1175, %v1173
        %v1186 = vpack.c.b16 %v1178, %v1176
        %v1187 = vpack.c.b16 %v1179, %v1177
        %v1188 = vpack.c.b16 %v1182, %v1180
        %v1189 = vpack.c.b16 %v1183, %v1181
        %v1197 = vsel %vm475, %v1148, 0
        %1199 = vmatprep.subr.bf16.mxu0 %v1185
        %1200 = vmatpush1.bf16.msra.mxu0 %v1184
        %1201 = vmatprep.subr.bf16.mxu0 %v1187
        %1202 = vmatpush1.bf16.msra.mxu0 %v1186
        %1203 = vmatprep.subr.bf16.mxu0 %v1189
        %1204 = vmatpush1.bf16.msra.mxu0 %v1188
        %1205 = vmatprep.subr.bf16.mxu0 0
        %1206 = vmatpush1.bf16.msra.mxu0 0
        %1207 = vmatprep.subr.bf16.mxu0 0
        %1208 = vmatpush1.bf16.msra.mxu0 0
        %1209 = vmatprep.subr.bf16.mxu0 0
        %1210 = vmatpush1.bf16.msra.mxu0 0
        %1211 = vmatprep.subr.bf16.mxu0 0
        %1212 = vmatpush1.bf16.msra.mxu0 0
        %1213 = vmatprep.subr.bf16.mxu0 0
        %1214 = vmatpush1.bf16.msra.mxu0 0
        %1215 = vmatprep.subr.bf16.mxu0 0
        %1216 = vmatpush1.bf16.msra.mxu0 0
        %1217 = vmatprep.subr.bf16.mxu0 0
        %1218 = vmatpush1.bf16.msra.mxu0 0
        %1219 = vmatprep.subr.bf16.mxu0 0
        %1220 = vmatpush1.bf16.msra.mxu0 0
        %1221 = vmatprep.subr.bf16.mxu0 0
        %1222 = vmatpush1.bf16.msra.mxu0 0
        %1223 = vmatprep.subr.bf16.mxu0 0
        %1224 = vmatpush1.bf16.msra.mxu0 0
        %1225 = vmatprep.subr.bf16.mxu0 0
        %1226 = vmatpush1.bf16.msra.mxu0 0
        %1227 = vmatprep.subr.bf16.mxu0 0
        %1228 = vmatpush1.bf16.msra.mxu0 0
        %1229 = vmatprep.subr.bf16.mxu0 0
        %1230 = vmatpush1.bf16.msra.mxu0 0
        %1231 = vmatprep.mubr.bf16.mxu0 0
        %1232 = vmatmul.mubr.bf16.gmra.mrb[0].mxu0 %v1197
        %v1233 = vpop.f32.mrb[0].mxu0
        %v1234 = vadd.f32 %v1159, %v1233
        %v1235 = vpop.f32.mrb[0].mxu0
        %v1236 = vadd.f32 %v1163, %v1235
        %v1237 = vpop.f32.mrb[0].mxu0
        %v1238 = vpop.f32.mrb[0].mxu0
        %1239 = vdwg.mxu0
        %v1240 = vmul.f32 %v1234, 0.5
        %v1241 = vmul.f32 %v1236, 0.5
        %v1242 = vmul.f32 %v1234, 0.70710677
        %v1243 = vmul.f32 %v1236, 0.70710677
        %v1244 = verf.f32.pop %v1242
        %v1245 = verf.f32.pop %v1243
        %v1246 = vadd.f32 %v1244, 1.0
        %v1247 = vadd.f32 %v1245, 1.0
        %v1248 = vmul.f32 %v1240, %v1246
        %v1249 = vmul.f32 %v1241, %v1247
        %v1250 = vpack.c.bf16 %v1248, %v1248
        %v1251 = vpack.c.bf16 %v1249, %v1249
        %v1252 = vld [vmem:[%s444] sm:$0xf]
        %v1253 = vld [vmem:[%s444 + $0x4] sm:$0xf]
        %v1254 = vld [vmem:[%s444 + $0x8] sm:$0xf]
        %v1255 = vld [vmem:[%s444 + $0xc] sm:$0xf]
        %v1256 = vld [vmem:[%s444 + $0x10] sm:$0xf]
        %v1257 = vld [vmem:[%s444 + $0x14] sm:$0xf]
        %v1258 = vld [vmem:[%s444 + $0x18] sm:$0xf]
        %v1259 = vld [vmem:[%s444 + $0x1c] sm:$0xf]
        %v1260 = vld [vmem:[%s444 + $0x20] sm:$0xf]
        %v1261 = vld [vmem:[%s444 + $0x24] sm:$0xf]
        %v1262 = vld [vmem:[%s444 + $0x28] sm:$0xf]
        %v1263 = vld [vmem:[%s444 + $0x2c] sm:$0xf]
        %v1264 = vld [vmem:[%s444 + $0x30] sm:$0xf]
        %v1265 = vld [vmem:[%s444 + $0x34] sm:$0xf]
        %v1266 = vld [vmem:[%s444 + $0x38] sm:$0xf]
        %v1267 = vld [vmem:[%s444 + $0x3c] sm:$0xf]
        %v1268 = vld [vmem:[%s444 + $0x40] sm:$0xf]
        %v1269 = vld [vmem:[%s444 + $0x44] sm:$0xf]
        %v1270 = vld [vmem:[%s444 + $0x48] sm:$0xf]
        %v1271 = vld [vmem:[%s444 + $0x4c] sm:$0xf]
        %v1272 = vld [vmem:[%s444 + $0x50] sm:$0xf]
        %v1273 = vld [vmem:[%s444 + $0x54] sm:$0xf]
        %v1274 = vld [vmem:[%s444 + $0x58] sm:$0xf]
        %v1275 = vld [vmem:[%s444 + $0x5c] sm:$0xf]
        %v1300 = vunpack.c.l.b16 %v1252
        %v1301 = vunpack.c.l.b16 %v1253
        %v1302 = vunpack.c.l.b16 %v1254
        %v1303 = vunpack.c.l.b16 %v1255
        %v1304 = vunpack.c.l.b16 %v1256
        %v1305 = vunpack.c.l.b16 %v1257
        %v1306 = vunpack.c.l.b16 %v1258
        %v1307 = vunpack.c.l.b16 %v1259
        %v1308 = vunpack.c.l.b16 %v1260
        %v1309 = vunpack.c.l.b16 %v1261
        %v1310 = vunpack.c.l.b16 %v1262
        %v1311 = vunpack.c.l.b16 %v1263
        %v1312 = vunpack.c.l.b16 %v1264
        %v1313 = vunpack.c.l.b16 %v1265
        %v1314 = vunpack.c.l.b16 %v1266
        %v1315 = vunpack.c.l.b16 %v1267
        %v1316 = vunpack.c.l.b16 %v1268
        %v1317 = vunpack.c.l.b16 %v1269
        %v1318 = vunpack.c.l.b16 %v1270
        %v1319 = vunpack.c.l.b16 %v1271
        %v1320 = vunpack.c.l.b16 %v1272
        %v1321 = vunpack.c.l.b16 %v1273
        %v1322 = vunpack.c.l.b16 %v1274
        %v1323 = vunpack.c.l.b16 %v1275
        %v1324 = vpack.c.b16 %v1301, %v1300
        %v1325 = vpack.c.b16 %v1303, %v1302
        %v1326 = vpack.c.b16 %v1305, %v1304
        %v1327 = vpack.c.b16 %v1307, %v1306
        %v1328 = vpack.c.b16 %v1309, %v1308
        %v1329 = vpack.c.b16 %v1311, %v1310
        %v1330 = vpack.c.b16 %v1313, %v1312
        %v1331 = vpack.c.b16 %v1315, %v1314
        %v1332 = vpack.c.b16 %v1317, %v1316
        %v1333 = vpack.c.b16 %v1319, %v1318
        %v1334 = vpack.c.b16 %v1321, %v1320
        %v1335 = vpack.c.b16 %v1323, %v1322
        %vm1348 = vcmask 523264
        %v1350 = vsel %vm1348, %v1251, 0
        %1352 = vmatprep.subr.bf16.mxu0 0
        %1353 = vmatpush1.bf16.msra.mxu0 %v1324
        %1354 = vmatprep.subr.bf16.mxu0 0
        %1355 = vmatpush1.bf16.msra.mxu0 %v1325
        %1356 = vmatprep.subr.bf16.mxu0 0
        %1357 = vmatpush1.bf16.msra.mxu0 %v1326
        %1358 = vmatprep.subr.bf16.mxu0 0
        %1359 = vmatpush1.bf16.msra.mxu0 %v1327
        %1360 = vmatprep.subr.bf16.mxu0 0
        %1361 = vmatpush1.bf16.msra.mxu0 %v1328
        %1362 = vmatprep.subr.bf16.mxu0 0
        %1363 = vmatpush1.bf16.msra.mxu0 %v1329
        %1364 = vmatprep.subr.bf16.mxu0 0
        %1365 = vmatpush1.bf16.msra.mxu0 %v1330
        %1366 = vmatprep.subr.bf16.mxu0 0
        %1367 = vmatpush1.bf16.msra.mxu0 %v1331
        %1368 = vmatprep.subr.bf16.mxu0 0
        %1369 = vmatpush1.bf16.msra.mxu0 %v1332
        %1370 = vmatprep.subr.bf16.mxu0 0
        %1371 = vmatpush1.bf16.msra.mxu0 %v1333
        %1372 = vmatprep.subr.bf16.mxu0 0
        %1373 = vmatpush1.bf16.msra.mxu0 %v1334
        %1374 = vmatprep.subr.bf16.mxu0 0
        %1375 = vmatpush1.bf16.msra.mxu0 %v1335
        %1376 = vmatprep.subr.bf16.mxu0 0
        %1377 = vmatpush1.bf16.msra.mxu0 0
        %1378 = vmatprep.subr.bf16.mxu0 0
        %1379 = vmatpush1.bf16.msra.mxu0 0
        %1380 = vmatprep.subr.bf16.mxu0 0
        %1381 = vmatpush1.bf16.msra.mxu0 0
        %1382 = vmatprep.subr.bf16.mxu0 0
        %1383 = vmatpush1.bf16.msra.mxu0 0
        %1384 = vmatprep.mubr.bf16.mxu0 %v1350
        %1385 = vmatmul.mubr.bf16.gmra.mrb[0].mxu0 %v1250
        %v1386 = vpop.f32.mrb[0].mxu0
        %v1387 = vadd.f32 %v474, %v1386
        %v1388 = vpop.f32.mrb[0].mxu0
        %v1389 = vpop.f32.mrb[0].mxu0
        %v1390 = vpop.f32.mrb[0].mxu0
        %1391 = vdwg.mxu0
        %v1392 = vadd.f32 %v1132, %v1387
        %1393 = vst.msk [vmem:[%s463] sm:$0xff] %vm475, %v1392
        %1394 = vst.msk [vmem:[#allocation4] sm:$0xff] %vm475, %v1392
        %p1395 = scmp.eq.s32.totalorder %s25, 1
        // Predicated region
        $region61: #{tpu_custom_call.1} parent=55 // pred_check
          %p1396 = pneg %p1395
        $region62: #{tpu_custom_call.1} parent=55 // pred_check_branch
          %1398 = sbr.rel (%p1396) target = $region64
        $region63: #{tpu_custom_call.1} parent=55 // pred_region
          %v1399 = vld [vmem:[%s7] sm:$0x1]
          %v1400 = vld [vmem:[%s8] sm:$0x1]
          %v1401 = vsel %vm475, %v1392, 0.0
          %1402 = vadd.xlane.f32.xlu0 %v1401
          %v1403 = vpop.xlane.xlu0 %1402
          %v1404 = vmul.f32 %v1403, %v479
          %v1405 = vsub.f32 %v1392, %v1404
          %v1406 = vmul.f32 %v1405, %v1405
          %v1407 = vsel %vm475, %v1406, 0.0
          %1408 = vadd.xlane.f32.xlu0 %v1407
          %v1409 = vpop.xlane.xlu0 %1408
          %v1410 = vmul.f32 %v1409, %v479
          %v1411 = vadd.f32 %v1410, 1e-05
          %v1412 = vrsqrt.pop %v1411
          %v1413 = vmul.f32 %v1405, %v1412
          %v1415 = vlaneseq
          %v1416 = vshrl.u32 %v1415, 7
          %v1417 = vsub.s32 0, %v1416
          %v1418 = vrot.slane %v1399, %v1417
          %v1420 = vmul.f32 %v1413, %v1418
          %v1422 = vlaneseq
          %v1423 = vshrl.u32 %v1422, 7
          %v1424 = vsub.s32 0, %v1423
          %v1425 = vrot.slane %v1400, %v1424
          %v1427 = vadd.f32 %v1420, %v1425
          %1428 = vst.msk [vmem:[#allocation4] sm:$0xff] %vm475, %v1427
        $region64: #{tpu_custom_call.1} parent=55 // pred_fallthru
          _
        // Predicated region
        $region65: #{tpu_custom_call.1} parent=55 // pred_check
          %p1429 = pneg %p275
        $region66: #{tpu_custom_call.1} parent=55 // pred_check_branch
          %1431 = sbr.rel (%p1429) target = $region68
        $region67: #{tpu_custom_call.1} parent=55 // pred_region
          %s1433 = ssub.s32 128, 128
          %1434 = vsyncadd [#allocation5], %s1433
          %s1435 = smul.addr %s26, 128
          %s1436 = scalar_lea.hbm %s9, %s1435
          %s1438 = sshll.u32 [#allocation4], 4
          %s1439 = int_to_ptr.vmem [resolvable:$true] %s1438
          %1441 = dma.vmem_to_hbm [thread:$0]  %s1439, 128, %s1436, [#allocation5]
        $region68: #{tpu_custom_call.1} parent=55 // pred_fallthru
          _
        // Predicated region
        $region69: #{tpu_custom_call.1} parent=55 // pred_check
          %p1442 = pneg %p275
        $region70: #{tpu_custom_call.1} parent=55 // pred_check_branch
          %1444 = sbr.rel (%p1442) target = $region72
        $region71: #{tpu_custom_call.1} parent=55 // pred_region
          %1445 = dma.done [#allocation5], 128
        $region72: #{tpu_custom_call.1} parent=55 // pred_fallthru
          _
      $region56: #{tpu_custom_call.1} parent=5 // pred_fallthru
        _
      %p1446 = scmp.le.s32.totalorder 2, %s16
      // Predicated region
      $region73: #{tpu_custom_call.1} parent=5 // pred_check
        %p1447 = pneg %p1446
      $region74: #{tpu_custom_call.1} parent=5 // pred_check_branch
        %1449 = sbr.rel (%p1447) target = $region76
      $region75: #{tpu_custom_call.1} parent=5 // pred_region
        %s1450 = ssub.s32 %s16, 2
      $region76: #{tpu_custom_call.1} parent=5 // pred_fallthru
        _
    $region6: #{tpu_custom_call.1} parent=1 // loop_footer
      %s20 = sadd.s32 1, %s16
    $region7: #{tpu_custom_call.1} parent=1 // loop_footer_branch
      %15 = sbr.rel target = $region3
    $region8: #{tpu_custom_call.1} parent=1 // loop_exit
      _
    %1451 = vsyncpa [#allocation5], 1
    %s1452 = scalar_lea.sflag [#allocation5], 1
    %1453 = vsyncpa %s1452, 1

</llo_original>
